<compile_context>
chip_gen: v7x
topology: tpu7x:2x2x1
jax: 0.10.0
libtpu: 0.0.40
codegen_flags: <defaults>
</compile_context>

<pallas_src>
import jax
import jax.numpy as jnp
from jax.experimental import pallas as pl
from jax.experimental.pallas import tpu as pltpu

LANE = 128          # TPU lane width: pad all feature dims to a multiple of it
NEG_INF = -1e30     # bias for padded fc2 columns -> exp() == 0 in log_softmax


def pad_to(n, m):
    return ((n + m - 1) // m) * m


# ----------------------------------------------------------------------------
# Fused forward kernel: one grid step == one graph.
# ----------------------------------------------------------------------------
def graphsage_kernel(
    a_ref, pool_ref, x_ref,
    w1_ref, b1_ref, w2_ref, b2_ref, w3_ref, b3_ref, w4_ref, b4_ref,
    wfc1_ref, bfc1_ref, wfc2_ref, bfc2_ref,
    out_ref,
):
    a = a_ref[...]                       # [NG, NG]  bf16 mean-aggregation block
    x = x_ref[...]                       # [NG, Fp]  bf16 node features

    def sage_relu(x_bf16, w_ref, b_ref):
        # Aggregate-then-project: fin <= fout for every layer of this model,
        # so doing A @ x before the weight matmul is the cheaper order.
        agg = jnp.dot(a, x_bf16, preferred_element_type=jnp.float32)
        cat = jnp.concatenate([agg.astype(jnp.bfloat16), x_bf16], axis=-1)
        h = jnp.dot(cat, w_ref[...], preferred_element_type=jnp.float32)
        h = h + b_ref[...]                               # f32 bias
        return jnp.maximum(h, 0.0).astype(jnp.bfloat16)  # ReLU in f32

    x = sage_relu(x, w1_ref, b1_ref)
    x = sage_relu(x, w2_ref, b2_ref)
    x = sage_relu(x, w3_ref, b3_ref)
    x = sage_relu(x, w4_ref, b4_ref)     # [NG, 8H_pad] bf16

    # global_mean_pool for this graph: [1, NG] @ [NG, 8H_pad]  (tiny, f32 exact)
    pooled = jnp.dot(pool_ref[...], x.astype(jnp.float32),
                     preferred_element_type=jnp.float32)

    h = jnp.dot(pooled.astype(jnp.bfloat16), wfc1_ref[...],
                preferred_element_type=jnp.float32) + bfc1_ref[...]
    h = jnp.dot(h.astype(jnp.bfloat16), wfc2_ref[...],
                preferred_element_type=jnp.float32) + bfc2_ref[...]

    # log_softmax (f32). Padded logits carry a -1e30 bias -> contribute 0.
    m = jnp.max(h, axis=-1, keepdims=True)
    lse = jnp.log(jnp.sum(jnp.exp(h - m), axis=-1, keepdims=True)) + m
    logp = h - lse                                       # [1, H_pad]

    # Lane-dense [8, H_pad] store (sublane broadcast); wrapper keeps row 0.
    out_ref[...] = jnp.broadcast_to(logp, out_ref.shape)


def graphsage_forward(a_b, pool_b, x_b, packed, hidden_channels):
    """a_b: [G,NG,NG] bf16, pool_b: [G,1,NG] f32, x_b: [G,NG,Fp] bf16."""
    g = a_b.shape[0]
    h_pad = packed[-1].shape[-1]         # padded fc2 output width

    def graph_spec(shape):
        nd = len(shape)
        return pl.BlockSpec((None,) + tuple(shape[1:]),
                            lambda i, nd=nd: (i,) + (0,) * (nd - 1))

    in_specs = [graph_spec(a_b.shape), graph_spec(pool_b.shape),
                graph_spec(x_b.shape)]
    # Weights/biases: whole-array blocks, same block every step (no re-DMA).
    in_specs += [pl.BlockSpec(p.shape, lambda i: (0, 0)) for p in packed]

    out = pl.pallas_call(
        graphsage_kernel,
        grid=(g,),
        in_specs=in_specs,
        out_specs=pl.BlockSpec((None, 8, h_pad), lambda i: (i, 0, 0)),
        out_shape=jax.ShapeDtypeStruct((g, 8, h_pad), jnp.float32),
        compiler_params=pltpu.CompilerParams(
            dimension_semantics=("parallel",),        # graphs are independent
            vmem_limit_bytes=48 * 1024 * 1024),
    )(a_b, pool_b, x_b, *packed)
    return out[:, 0, :hidden_channels]


# ----------------------------------------------------------------------------
# Glue: params, per-graph batching, padding, and an f32 reference.
# ----------------------------------------------------------------------------
def init_params(key, num_node_features, hidden_channels):
    H = hidden_channels
    dims = [(num_node_features, H), (H, 2 * H), (2 * H, 4 * H), (4 * H, 8 * H)]
    params = {}
    keys = jax.random.split(key, 4 * 3 + 4)
    ki = 0
    for li, (fin, fout) in enumerate(dims, start=1):
        s = 1.0 / jnp.sqrt(fin)
        params[f"wl{li}"] = jax.random.uniform(keys[ki], (fout, fin), jnp.float32, -s, s); ki += 1
        params[f"wr{li}"] = jax.random.uniform(keys[ki], (fout, fin), jnp.float32, -s, s); ki += 1
        params[f"b{li}"]  = jax.random.uniform(keys[ki], (1, fout), jnp.float32, -s, s); ki += 1
    s1 = 1.0 / jnp.sqrt(8 * H)
    params["wfc1"] = jax.random.uniform(keys[ki], (4 * H, 8 * H), jnp.float32, -s1, s1); ki += 1
    params["bfc1"] = jax.random.uniform(keys[ki], (1, 4 * H), jnp.float32, -s1, s1); ki += 1
    s2 = 1.0 / jnp.sqrt(4 * H)
    params["wfc2"] = jax.random.uniform(keys[ki], (H, 4 * H), jnp.float32, -s2, s2); ki += 1
    params["bfc2"] = jax.random.uniform(keys[ki], (1, H), jnp.float32, -s2, s2); ki += 1
    return params


def pack_params(params, num_node_features, hidden_channels):
    """Pre-transpose to [fin,fout], fuse Wl/Wr, pad dims to 128, cast to bf16."""
    H = hidden_channels
    dims = [(num_node_features, H), (H, 2 * H), (2 * H, 4 * H), (4 * H, 8 * H)]
    packed = []
    for li, (fin, fout) in enumerate(dims, start=1):
        finp, foutp = pad_to(fin, LANE), pad_to(fout, LANE)
        w = jnp.zeros((2 * finp, foutp), jnp.float32)
        w = w.at[:fin, :fout].set(params[f"wl{li}"].T)              # agg path
        w = w.at[finp:finp + fin, :fout].set(params[f"wr{li}"].T)   # self path
        b = jnp.zeros((1, foutp), jnp.float32).at[:, :fout].set(params[f"b{li}"])
        packed += [w.astype(jnp.bfloat16), b]
    d_in1, d_out1 = 8 * H, 4 * H
    d_in1p, d_out1p = pad_to(d_in1, LANE), pad_to(d_out1, LANE)
    w = jnp.zeros((d_in1p, d_out1p), jnp.float32).at[:d_in1, :d_out1].set(params["wfc1"].T)
    b = jnp.zeros((1, d_out1p), jnp.float32).at[:, :d_out1].set(params["bfc1"])
    packed += [w.astype(jnp.bfloat16), b]
    d_out2p = pad_to(H, LANE)
    w = jnp.zeros((d_out1p, d_out2p), jnp.float32).at[:d_out1, :H].set(params["wfc2"].T)
    b = jnp.full((1, d_out2p), NEG_INF, jnp.float32).at[:, :H].set(params["bfc2"])
    packed += [w.astype(jnp.bfloat16), b]
    return packed


def build_per_graph_inputs(x, edge_index, batch, num_graphs, ng, f_pad):
    """Per-graph padded blocks: A_b [G,NG,NG], pool_b [G,1,NG], X_b [G,NG,Fp].

    Assumes PyG convention: `batch` is sorted and nodes of a graph contiguous.
    """
    n, f = x.shape
    counts = jnp.bincount(batch, length=num_graphs)
    offsets = jnp.concatenate([jnp.zeros((1,), counts.dtype),
                               jnp.cumsum(counts)[:-1]])
    local = jnp.arange(n) - offsets[batch]            # node index inside graph

    x_pad = jnp.zeros((n, f_pad), jnp.float32).at[:, :f].set(x)
    x_b = jnp.zeros((num_graphs, ng, f_pad), jnp.float32).at[batch, local].set(x_pad)

    src, dst = edge_index[0], edge_index[1]
    eg = batch[dst]
    a_b = jnp.zeros((num_graphs, ng, ng), jnp.float32)
    a_b = a_b.at[eg, local[dst], local[src]].add(1.0)
    deg = jnp.sum(a_b, axis=-1, keepdims=True)
    a_b = a_b / jnp.maximum(deg, 1.0)                 # row-normalized (mean aggr)

    pool_b = jnp.zeros((num_graphs, 1, ng), jnp.float32).at[batch, 0, local].set(1.0)
    pool_b = pool_b / jnp.maximum(jnp.sum(pool_b, axis=-1, keepdims=True), 1.0)

    return a_b.astype(jnp.bfloat16), pool_b, x_b.astype(jnp.bfloat16)


# ---- plain-JAX f32 reference (original whole-batch dense formulation) ------
def build_mean_adj(edge_index, num_nodes):
    src, dst = edge_index[0], edge_index[1]
    adj = jnp.zeros((num_nodes, num_nodes), jnp.float32).at[dst, src].add(1.0)
    deg = jnp.sum(adj, axis=1, keepdims=True)
    return adj / jnp.maximum(deg, 1.0)


def build_pool_matrix(batch, num_graphs):
    onehot = (batch[None, :] == jnp.arange(num_graphs)[:, None]).astype(jnp.float32)
    cnt = jnp.sum(onehot, axis=1, keepdims=True)
    return onehot / jnp.maximum(cnt, 1.0)


def reference_forward(a, p, x, params):
    def sage(x, wl, wr, b):
        agg = a @ x
        return jnp.maximum(agg @ wl.T + b + x @ wr.T, 0.0)
    x = sage(x, params["wl1"], params["wr1"], params["b1"])
    x = sage(x, params["wl2"], params["wr2"], params["b2"])
    x = sage(x, params["wl3"], params["wr3"], params["b3"])
    x = sage(x, params["wl4"], params["wr4"], params["b4"])
    pooled = p @ x
    h = pooled @ params["wfc1"].T + params["bfc1"]
    h = h @ params["wfc2"].T + params["bfc2"]
    return jax.nn.log_softmax(h, axis=1)


# ----------------------------------------------------------------------------
if __name__ == "__main__":
    # Small synthetic graph batch: 2 graphs x 4 nodes = 8 nodes
    num_node_features = 16
    hidden_channels = 32
    # note: the torch module's fc2 outputs hidden_channels (num_classes unused)
    num_nodes = 8
    num_graphs = 2
    nodes_per_graph = 4

    key = jax.random.PRNGKey(0)
    k_x, k_p = jax.random.split(key)
    x = jax.random.normal(k_x, (num_nodes, num_node_features), jnp.float32)

    # directed edges within each 4-node graph (ring + one chord per graph)
    edge_index = jnp.array(
        [[0, 1, 2, 3, 0, 4, 5, 6, 7, 4],    # src
         [1, 2, 3, 0, 2, 5, 6, 7, 4, 6]],   # dst
        dtype=jnp.int32)
    batch = jnp.array([0, 0, 0, 0, 1, 1, 1, 1], dtype=jnp.int32)

    params = init_params(k_p, num_node_features, hidden_channels)
    packed = pack_params(params, num_node_features, hidden_channels)

    ng = pad_to(nodes_per_graph, 8)                 # node tile per graph
    f_pad = pad_to(num_node_features, LANE)
    a_b, pool_b, x_b = build_per_graph_inputs(
        x, edge_index, batch, num_graphs, ng, f_pad)

    out = graphsage_forward(a_b, pool_b, x_b, packed, hidden_channels)
    out = jax.block_until_ready(out)

    assert out.shape == (num_graphs, hidden_channels)
    # log_softmax rows should sum (in prob space) to ~1
    assert jnp.allclose(jnp.sum(jnp.exp(out), axis=1), 1.0, atol=1e-3)

    # compare against whole-batch f32 reference (bf16 matmul tolerance)
    a_full = build_mean_adj(edge_index, num_nodes)
    p_full = build_pool_matrix(batch, num_graphs)
    ref = reference_forward(a_full, p_full, x, params)
    assert jnp.allclose(out, ref, atol=0.1, rtol=0.1), float(
        jnp.max(jnp.abs(out - ref)))

    print("KERNEL_OK")
</pallas_src>

<mosaic_0001>
module attributes {stable_mosaic.version = 11 : i64} {
  func.func @graphsage_kernel(%arg0: i32, %arg1: memref<1x8x8xbf16, #tpu.memory_space<vmem>>, %arg2: memref<1x1x8xf32, #tpu.memory_space<vmem>>, %arg3: memref<1x8x128xbf16, #tpu.memory_space<vmem>>, %arg4: memref<256x128xbf16, #tpu.memory_space<vmem>>, %arg5: memref<1x128xf32, #tpu.memory_space<vmem>>, %arg6: memref<256x128xbf16, #tpu.memory_space<vmem>>, %arg7: memref<1x128xf32, #tpu.memory_space<vmem>>, %arg8: memref<256x128xbf16, #tpu.memory_space<vmem>>, %arg9: memref<1x128xf32, #tpu.memory_space<vmem>>, %arg10: memref<256x256xbf16, #tpu.memory_space<vmem>>, %arg11: memref<1x256xf32, #tpu.memory_space<vmem>>, %arg12: memref<256x128xbf16, #tpu.memory_space<vmem>>, %arg13: memref<1x128xf32, #tpu.memory_space<vmem>>, %arg14: memref<128x128xbf16, #tpu.memory_space<vmem>>, %arg15: memref<1x128xf32, #tpu.memory_space<vmem>>, %arg16: memref<1x8x128xf32, #tpu.memory_space<vmem>>) attributes {dimension_semantics = [#tpu.dimension_semantics<parallel>], iteration_bounds = array<i64: 2>, scalar_prefetch = 0 : i64, scratch_operands = 0 : i64, tpu.core_type = #tpu.core_type<tc>, window_params = [{transform_indices = @transform_0, window_bounds = array<i64: 1, 8, 8>}, {transform_indices = @transform_1, window_bounds = array<i64: 1, 1, 8>}, {transform_indices = @transform_2, window_bounds = array<i64: 1, 8, 128>}, {pipeline_mode = #tpu.pipeline_mode<synchronous>, transform_indices = @transform_3, window_bounds = array<i64: 256, 128>}, {pipeline_mode = #tpu.pipeline_mode<synchronous>, transform_indices = @transform_4, window_bounds = array<i64: 1, 128>}, {pipeline_mode = #tpu.pipeline_mode<synchronous>, transform_indices = @transform_5, window_bounds = array<i64: 256, 128>}, {pipeline_mode = #tpu.pipeline_mode<synchronous>, transform_indices = @transform_6, window_bounds = array<i64: 1, 128>}, {pipeline_mode = #tpu.pipeline_mode<synchronous>, transform_indices = @transform_7, window_bounds = array<i64: 256, 128>}, {pipeline_mode = #tpu.pipeline_mode<synchronous>, transform_indices = @transform_8, window_bounds = array<i64: 1, 128>}, {pipeline_mode = #tpu.pipeline_mode<synchronous>, transform_indices = @transform_9, window_bounds = array<i64: 256, 256>}, {pipeline_mode = #tpu.pipeline_mode<synchronous>, transform_indices = @transform_10, window_bounds = array<i64: 1, 256>}, {pipeline_mode = #tpu.pipeline_mode<synchronous>, transform_indices = @transform_11, window_bounds = array<i64: 256, 128>}, {pipeline_mode = #tpu.pipeline_mode<synchronous>, transform_indices = @transform_12, window_bounds = array<i64: 1, 128>}, {pipeline_mode = #tpu.pipeline_mode<synchronous>, transform_indices = @transform_13, window_bounds = array<i64: 128, 128>}, {pipeline_mode = #tpu.pipeline_mode<synchronous>, transform_indices = @transform_14, window_bounds = array<i64: 1, 128>}, {transform_indices = @transform_15, window_bounds = array<i64: 1, 8, 128>}]} {
    %c0 = arith.constant 0 : index
    %c0_0 = arith.constant 0 : index
    %c0_1 = arith.constant 0 : index
    %0 = vector.load %arg1[%c0, %c0_0, %c0_1] : memref<1x8x8xbf16, #tpu.memory_space<vmem>>, vector<1x8x8xbf16>
    %1 = vector.shape_cast %0 : vector<1x8x8xbf16> to vector<8x8xbf16>
    %c0_2 = arith.constant 0 : index
    %c0_3 = arith.constant 0 : index
    %c0_4 = arith.constant 0 : index
    %2 = vector.load %arg3[%c0_2, %c0_3, %c0_4] : memref<1x8x128xbf16, #tpu.memory_space<vmem>>, vector<1x8x128xbf16>
    %3 = vector.shape_cast %2 : vector<1x8x128xbf16> to vector<8x128xbf16>
    %cst = arith.constant dense<0.000000e+00> : vector<8x128xf32>
    %4 = tpu.matmul %1, %3, %cst {dimension_numbers = #tpu.dot_dimension_numbers<[1], [0], [0], [1], [0, 0, 1, 1], [], []>} : vector<8x8xbf16>, vector<8x128xbf16>, vector<8x128xf32> -> vector<8x128xf32>
    %5 = arith.truncf %4 : vector<8x128xf32> to vector<8x128xbf16>
    %6 = tpu.concatenate %5, %3 in 1 : vector<8x128xbf16>, vector<8x128xbf16> -> vector<8x256xbf16>
    %c0_5 = arith.constant 0 : index
    %c0_6 = arith.constant 0 : index
    %7 = vector.load %arg4[%c0_5, %c0_6] : memref<256x128xbf16, #tpu.memory_space<vmem>>, vector<256x128xbf16>
    %cst_7 = arith.constant dense<0.000000e+00> : vector<8x128xf32>
    %8 = tpu.matmul %6, %7, %cst_7 {dimension_numbers = #tpu.dot_dimension_numbers<[1], [0], [0], [1], [0, 0, 1, 1], [], []>} : vector<8x256xbf16>, vector<256x128xbf16>, vector<8x128xf32> -> vector<8x128xf32>
    %c0_8 = arith.constant 0 : index
    %c0_9 = arith.constant 0 : index
    %9 = vector.load %arg5[%c0_8, %c0_9] : memref<1x128xf32, #tpu.memory_space<vmem>>, vector<1x128xf32>
    %10 = vector.broadcast %9 : vector<1x128xf32> to vector<8x128xf32>
    %11 = arith.addf %8, %10 : vector<8x128xf32>
    %cst_10 = arith.constant 0.000000e+00 : f32
    %12 = vector.broadcast %cst_10 : f32 to vector<8x128xf32>
    %13 = arith.maximumf %11, %12 : vector<8x128xf32>
    %14 = arith.truncf %13 : vector<8x128xf32> to vector<8x128xbf16>
    %cst_11 = arith.constant dense<0.000000e+00> : vector<8x128xf32>
    %15 = tpu.matmul %1, %14, %cst_11 {dimension_numbers = #tpu.dot_dimension_numbers<[1], [0], [0], [1], [0, 0, 1, 1], [], []>} : vector<8x8xbf16>, vector<8x128xbf16>, vector<8x128xf32> -> vector<8x128xf32>
    %16 = arith.truncf %15 : vector<8x128xf32> to vector<8x128xbf16>
    %17 = tpu.concatenate %16, %14 in 1 : vector<8x128xbf16>, vector<8x128xbf16> -> vector<8x256xbf16>
    %c0_12 = arith.constant 0 : index
    %c0_13 = arith.constant 0 : index
    %18 = vector.load %arg6[%c0_12, %c0_13] : memref<256x128xbf16, #tpu.memory_space<vmem>>, vector<256x128xbf16>
    %cst_14 = arith.constant dense<0.000000e+00> : vector<8x128xf32>
    %19 = tpu.matmul %17, %18, %cst_14 {dimension_numbers = #tpu.dot_dimension_numbers<[1], [0], [0], [1], [0, 0, 1, 1], [], []>} : vector<8x256xbf16>, vector<256x128xbf16>, vector<8x128xf32> -> vector<8x128xf32>
    %c0_15 = arith.constant 0 : index
    %c0_16 = arith.constant 0 : index
    %20 = vector.load %arg7[%c0_15, %c0_16] : memref<1x128xf32, #tpu.memory_space<vmem>>, vector<1x128xf32>
    %21 = vector.broadcast %20 : vector<1x128xf32> to vector<8x128xf32>
    %22 = arith.addf %19, %21 : vector<8x128xf32>
    %cst_17 = arith.constant 0.000000e+00 : f32
    %23 = vector.broadcast %cst_17 : f32 to vector<8x128xf32>
    %24 = arith.maximumf %22, %23 : vector<8x128xf32>
    %25 = arith.truncf %24 : vector<8x128xf32> to vector<8x128xbf16>
    %cst_18 = arith.constant dense<0.000000e+00> : vector<8x128xf32>
    %26 = tpu.matmul %1, %25, %cst_18 {dimension_numbers = #tpu.dot_dimension_numbers<[1], [0], [0], [1], [0, 0, 1, 1], [], []>} : vector<8x8xbf16>, vector<8x128xbf16>, vector<8x128xf32> -> vector<8x128xf32>
    %27 = arith.truncf %26 : vector<8x128xf32> to vector<8x128xbf16>
    %28 = tpu.concatenate %27, %25 in 1 : vector<8x128xbf16>, vector<8x128xbf16> -> vector<8x256xbf16>
    %c0_19 = arith.constant 0 : index
    %c0_20 = arith.constant 0 : index
    %29 = vector.load %arg8[%c0_19, %c0_20] : memref<256x128xbf16, #tpu.memory_space<vmem>>, vector<256x128xbf16>
    %cst_21 = arith.constant dense<0.000000e+00> : vector<8x128xf32>
    %30 = tpu.matmul %28, %29, %cst_21 {dimension_numbers = #tpu.dot_dimension_numbers<[1], [0], [0], [1], [0, 0, 1, 1], [], []>} : vector<8x256xbf16>, vector<256x128xbf16>, vector<8x128xf32> -> vector<8x128xf32>
    %c0_22 = arith.constant 0 : index
    %c0_23 = arith.constant 0 : index
    %31 = vector.load %arg9[%c0_22, %c0_23] : memref<1x128xf32, #tpu.memory_space<vmem>>, vector<1x128xf32>
    %32 = vector.broadcast %31 : vector<1x128xf32> to vector<8x128xf32>
    %33 = arith.addf %30, %32 : vector<8x128xf32>
    %cst_24 = arith.constant 0.000000e+00 : f32
    %34 = vector.broadcast %cst_24 : f32 to vector<8x128xf32>
    %35 = arith.maximumf %33, %34 : vector<8x128xf32>
    %36 = arith.truncf %35 : vector<8x128xf32> to vector<8x128xbf16>
    %cst_25 = arith.constant dense<0.000000e+00> : vector<8x128xf32>
    %37 = tpu.matmul %1, %36, %cst_25 {dimension_numbers = #tpu.dot_dimension_numbers<[1], [0], [0], [1], [0, 0, 1, 1], [], []>} : vector<8x8xbf16>, vector<8x128xbf16>, vector<8x128xf32> -> vector<8x128xf32>
    %38 = arith.truncf %37 : vector<8x128xf32> to vector<8x128xbf16>
    %39 = tpu.concatenate %38, %36 in 1 : vector<8x128xbf16>, vector<8x128xbf16> -> vector<8x256xbf16>
    %c0_26 = arith.constant 0 : index
    %c0_27 = arith.constant 0 : index
    %40 = vector.load %arg10[%c0_26, %c0_27] : memref<256x256xbf16, #tpu.memory_space<vmem>>, vector<256x256xbf16>
    %cst_28 = arith.constant dense<0.000000e+00> : vector<8x256xf32>
    %41 = tpu.matmul %39, %40, %cst_28 {dimension_numbers = #tpu.dot_dimension_numbers<[1], [0], [0], [1], [0, 0, 1, 1], [], []>} : vector<8x256xbf16>, vector<256x256xbf16>, vector<8x256xf32> -> vector<8x256xf32>
    %c0_29 = arith.constant 0 : index
    %c0_30 = arith.constant 0 : index
    %42 = vector.load %arg11[%c0_29, %c0_30] : memref<1x256xf32, #tpu.memory_space<vmem>>, vector<1x256xf32>
    %43 = vector.broadcast %42 : vector<1x256xf32> to vector<8x256xf32>
    %44 = arith.addf %41, %43 : vector<8x256xf32>
    %cst_31 = arith.constant 0.000000e+00 : f32
    %45 = vector.broadcast %cst_31 : f32 to vector<8x256xf32>
    %46 = arith.maximumf %44, %45 : vector<8x256xf32>
    %47 = arith.truncf %46 : vector<8x256xf32> to vector<8x256xbf16>
    %c0_32 = arith.constant 0 : index
    %c0_33 = arith.constant 0 : index
    %c0_34 = arith.constant 0 : index
    %48 = vector.load %arg2[%c0_32, %c0_33, %c0_34] : memref<1x1x8xf32, #tpu.memory_space<vmem>>, vector<1x1x8xf32>
    %49 = vector.shape_cast %48 : vector<1x1x8xf32> to vector<1x8xf32>
    %50 = arith.extf %47 : vector<8x256xbf16> to vector<8x256xf32>
    %cst_35 = arith.constant dense<0.000000e+00> : vector<1x256xf32>
    %51 = tpu.matmul %49, %50, %cst_35 {dimension_numbers = #tpu.dot_dimension_numbers<[1], [0], [0], [1], [0, 0, 1, 1], [], []>} : vector<1x8xf32>, vector<8x256xf32>, vector<1x256xf32> -> vector<1x256xf32>
    %52 = arith.truncf %51 : vector<1x256xf32> to vector<1x256xbf16>
    %c0_36 = arith.constant 0 : index
    %c0_37 = arith.constant 0 : index
    %53 = vector.load %arg12[%c0_36, %c0_37] : memref<256x128xbf16, #tpu.memory_space<vmem>>, vector<256x128xbf16>
    %cst_38 = arith.constant dense<0.000000e+00> : vector<1x128xf32>
    %54 = tpu.matmul %52, %53, %cst_38 {dimension_numbers = #tpu.dot_dimension_numbers<[1], [0], [0], [1], [0, 0, 1, 1], [], []>} : vector<1x256xbf16>, vector<256x128xbf16>, vector<1x128xf32> -> vector<1x128xf32>
    %c0_39 = arith.constant 0 : index
    %c0_40 = arith.constant 0 : index
    %55 = vector.load %arg13[%c0_39, %c0_40] : memref<1x128xf32, #tpu.memory_space<vmem>>, vector<1x128xf32>
    %56 = arith.addf %54, %55 : vector<1x128xf32>
    %57 = arith.truncf %56 : vector<1x128xf32> to vector<1x128xbf16>
    %c0_41 = arith.constant 0 : index
    %c0_42 = arith.constant 0 : index
    %58 = vector.load %arg14[%c0_41, %c0_42] : memref<128x128xbf16, #tpu.memory_space<vmem>>, vector<128x128xbf16>
    %cst_43 = arith.constant dense<0.000000e+00> : vector<1x128xf32>
    %59 = tpu.matmul %57, %58, %cst_43 {dimension_numbers = #tpu.dot_dimension_numbers<[1], [0], [0], [1], [0, 0, 1, 1], [], []>} : vector<1x128xbf16>, vector<128x128xbf16>, vector<1x128xf32> -> vector<1x128xf32>
    %c0_44 = arith.constant 0 : index
    %c0_45 = arith.constant 0 : index
    %60 = vector.load %arg15[%c0_44, %c0_45] : memref<1x128xf32, #tpu.memory_space<vmem>>, vector<1x128xf32>
    %61 = arith.addf %59, %60 : vector<1x128xf32>
    %cst_46 = arith.constant dense<0xFF800000> : vector<1xf32>
    %62 = vector.multi_reduction <maximumf>, %61, %cst_46 [1] : vector<1x128xf32> to vector<1xf32>
    %63 = vector.shape_cast %62 : vector<1xf32> to vector<1x1xf32>
    %64 = vector.broadcast %63 : vector<1x1xf32> to vector<1x128xf32>
    %65 = arith.subf %61, %64 : vector<1x128xf32>
    %66 = math.exp %65 : vector<1x128xf32>
    %cst_47 = arith.constant dense<0.000000e+00> : vector<1xf32>
    %67 = vector.multi_reduction <add>, %66, %cst_47 [1] : vector<1x128xf32> to vector<1xf32>
    %68 = vector.shape_cast %67 : vector<1xf32> to vector<1x1xf32>
    %69 = math.log %68 : vector<1x1xf32>
    %70 = arith.addf %69, %63 : vector<1x1xf32>
    %71 = vector.broadcast %70 : vector<1x1xf32> to vector<1x128xf32>
    %72 = arith.subf %61, %71 : vector<1x128xf32>
    %73 = vector.shape_cast %72 : vector<1x128xf32> to vector<1x128xf32>
    %74 = vector.broadcast %73 : vector<1x128xf32> to vector<8x128xf32>
    %c0_48 = arith.constant 0 : index
    %c0_49 = arith.constant 0 : index
    %c0_50 = arith.constant 0 : index
    %75 = vector.load %arg16[%c0_48, %c0_49, %c0_50] : memref<1x8x128xf32, #tpu.memory_space<vmem>>, vector<1x8x128xf32>
    %76 = vector.shape_cast %75 : vector<1x8x128xf32> to vector<8x128xf32>
    %77 = vector.shape_cast %74 : vector<8x128xf32> to vector<1x8x128xf32>
    tpu.vector_store %arg16[%c0_48, %c0_49, %c0_50], %77 {strides = array<i32>} : memref<1x8x128xf32, #tpu.memory_space<vmem>>, vector<1x8x128xf32>,
    return
  }
  func.func @transform_0(%arg0: i32) -> (i32, i32, i32) {
    %c0_i32 = arith.constant 0 : i32
    %c0_i32_0 = arith.constant 0 : i32
    %c0_i32_1 = arith.constant 0 : i32
    return %arg0, %c0_i32, %c0_i32_0 : i32, i32, i32
  }
  func.func @transform_1(%arg0: i32) -> (i32, i32, i32) {
    %c0_i32 = arith.constant 0 : i32
    %c0_i32_0 = arith.constant 0 : i32
    %c0_i32_1 = arith.constant 0 : i32
    return %arg0, %c0_i32, %c0_i32_0 : i32, i32, i32
  }
  func.func @transform_2(%arg0: i32) -> (i32, i32, i32) {
    %c0_i32 = arith.constant 0 : i32
    %c0_i32_0 = arith.constant 0 : i32
    %c0_i32_1 = arith.constant 0 : i32
    return %arg0, %c0_i32, %c0_i32_0 : i32, i32, i32
  }
  func.func @transform_3(%arg0: i32) -> (i32, i32) {
    %c0_i32 = arith.constant 0 : i32
    %c0_i32_0 = arith.constant 0 : i32
    %c0_i32_1 = arith.constant 0 : i32
    return %c0_i32, %c0_i32_0 : i32, i32
  }
  func.func @transform_4(%arg0: i32) -> (i32, i32) {
    %c0_i32 = arith.constant 0 : i32
    %c0_i32_0 = arith.constant 0 : i32
    %c0_i32_1 = arith.constant 0 : i32
    return %c0_i32, %c0_i32_0 : i32, i32
  }
  func.func @transform_5(%arg0: i32) -> (i32, i32) {
    %c0_i32 = arith.constant 0 : i32
    %c0_i32_0 = arith.constant 0 : i32
    %c0_i32_1 = arith.constant 0 : i32
    return %c0_i32, %c0_i32_0 : i32, i32
  }
  func.func @transform_6(%arg0: i32) -> (i32, i32) {
    %c0_i32 = arith.constant 0 : i32
    %c0_i32_0 = arith.constant 0 : i32
    %c0_i32_1 = arith.constant 0 : i32
    return %c0_i32, %c0_i32_0 : i32, i32
  }
  func.func @transform_7(%arg0: i32) -> (i32, i32) {
    %c0_i32 = arith.constant 0 : i32
    %c0_i32_0 = arith.constant 0 : i32
    %c0_i32_1 = arith.constant 0 : i32
    return %c0_i32, %c0_i32_0 : i32, i32
  }
  func.func @transform_8(%arg0: i32) -> (i32, i32) {
    %c0_i32 = arith.constant 0 : i32
    %c0_i32_0 = arith.constant 0 : i32
    %c0_i32_1 = arith.constant 0 : i32
    return %c0_i32, %c0_i32_0 : i32, i32
  }
  func.func @transform_9(%arg0: i32) -> (i32, i32) {
    %c0_i32 = arith.constant 0 : i32
    %c0_i32_0 = arith.constant 0 : i32
    %c0_i32_1 = arith.constant 0 : i32
    return %c0_i32, %c0_i32_0 : i32, i32
  }
  func.func @transform_10(%arg0: i32) -> (i32, i32) {
    %c0_i32 = arith.constant 0 : i32
    %c0_i32_0 = arith.constant 0 : i32
    %c0_i32_1 = arith.constant 0 : i32
    return %c0_i32, %c0_i32_0 : i32, i32
  }
  func.func @transform_11(%arg0: i32) -> (i32, i32) {
    %c0_i32 = arith.constant 0 : i32
    %c0_i32_0 = arith.constant 0 : i32
    %c0_i32_1 = arith.constant 0 : i32
    return %c0_i32, %c0_i32_0 : i32, i32
  }
  func.func @transform_12(%arg0: i32) -> (i32, i32) {
    %c0_i32 = arith.constant 0 : i32
    %c0_i32_0 = arith.constant 0 : i32
    %c0_i32_1 = arith.constant 0 : i32
    return %c0_i32, %c0_i32_0 : i32, i32
  }
  func.func @transform_13(%arg0: i32) -> (i32, i32) {
    %c0_i32 = arith.constant 0 : i32
    %c0_i32_0 = arith.constant 0 : i32
    %c0_i32_1 = arith.constant 0 : i32
    return %c0_i32, %c0_i32_0 : i32, i32
  }
  func.func @transform_14(%arg0: i32) -> (i32, i32) {
    %c0_i32 = arith.constant 0 : i32
    %c0_i32_0 = arith.constant 0 : i32
    %c0_i32_1 = arith.constant 0 : i32
    return %c0_i32, %c0_i32_0 : i32, i32
  }
  func.func @transform_15(%arg0: i32) -> (i32, i32, i32) {
    %c0_i32 = arith.constant 0 : i32
    %c0_i32_0 = arith.constant 0 : i32
    %c0_i32_1 = arith.constant 0 : i32
    return %arg0, %c0_i32, %c0_i32_0 : i32, i32, i32
  }
}

</mosaic_0001>

<llo_original>
// kernel: tpu_custom_call.1
$region0: #{tpu_custom_call.1}
  #allocation0 [shape = 'u32[]', space=smem, size = 0x4, offset = 0x4, fixed_abs, tag = 'smem constant byte address 0x4 - core index']
  #allocation1 [shape = 'u32[144,128]{1,0:T(1,128)}', space=vmem, size = 0x12000, scoped, tag = 'internal scratch']
  %s0 = inlined_call_operand.hbm [shape: bf16[2,8,8], index: 0, kind: input, shape index: {}]
  %s1 = inlined_call_operand.vmem [shape: f32[2,1,8], index: 1, kind: input, shape index: {}]
  %s2 = inlined_call_operand.hbm [shape: bf16[2,8,128], index: 2, kind: input, shape index: {}]
  %s3 = inlined_call_operand.hbm [shape: bf16[256,128], index: 3, kind: input, shape index: {}]
  %s4 = inlined_call_operand.vmem [shape: f32[1,128], index: 4, kind: input, shape index: {}]
  %s5 = inlined_call_operand.hbm [shape: bf16[256,128], index: 5, kind: input, shape index: {}]
  %s6 = inlined_call_operand.vmem [shape: f32[1,128], index: 6, kind: input, shape index: {}]
  %s7 = inlined_call_operand.hbm [shape: bf16[256,128], index: 7, kind: input, shape index: {}]
  %s8 = inlined_call_operand.vmem [shape: f32[1,128], index: 8, kind: input, shape index: {}]
  %s9 = inlined_call_operand.hbm [shape: bf16[256,256], index: 9, kind: input, shape index: {}]
  %s10 = inlined_call_operand.vmem [shape: f32[1,256], index: 10, kind: input, shape index: {}]
  %s11 = inlined_call_operand.hbm [shape: bf16[256,128], index: 11, kind: input, shape index: {}]
  %s12 = inlined_call_operand.vmem [shape: f32[1,128], index: 12, kind: input, shape index: {}]
  %s13 = inlined_call_operand.hbm [shape: bf16[128,128], index: 13, kind: input, shape index: {}]
  %s14 = inlined_call_operand.vmem [shape: f32[1,128], index: 14, kind: input, shape index: {}]
  %s15 = inlined_call_operand.hbm [shape: f32[2,8,128], index: 15, kind: output, shape index: {}]
  %s16 = sld [smem:[#allocation0]]
  $region125: #{tpu_custom_call.1} parent=0
    _
  %s18 = ssub.s32 1, %s16
  %s19 = scalar_select 0, %s18, %s16
  $region1: #{tpu_custom_call.1} parent=0
    #allocation2 [shape = 'u8[4096]{0}', space=vmem, size = 0x1000, scoped, tag = 'input window, operand 0']
    #allocation3 [shape = 's32[2]{0}', space=sflag, size = 0x8, scoped, tag = 'scoped memory for tpu_custom_call.1']
    #allocation4 [shape = 's32[2]{0}', space=sflag, size = 0x8, scoped, tag = 'scoped memory for tpu_custom_call.1']
    #allocation5 [shape = 'u8[4096]{0}', space=vmem, size = 0x1000, scoped, tag = 'input window, operand 2']
    #allocation6 [shape = 's32[2]{0}', space=sflag, size = 0x8, scoped, tag = 'scoped memory for tpu_custom_call.1']
    #allocation7 [shape = 'u8[65536]{0}', space=vmem, size = 0x10000, scoped, tag = 'input window, operand 3, single buffered']
    #allocation8 [shape = 'u8[65536]{0}', space=vmem, size = 0x10000, scoped, tag = 'input window, operand 5, single buffered']
    #allocation9 [shape = 's32[1]{0}', space=sflag, size = 0x4, scoped, tag = 'scoped memory for tpu_custom_call.1']
    #allocation10 [shape = 'u8[65536]{0}', space=vmem, size = 0x10000, scoped, tag = 'input window, operand 7, single buffered']
    #allocation11 [shape = 'u8[131072]{0}', space=vmem, size = 0x20000, scoped, tag = 'input window, operand 9, single buffered']
    #allocation12 [shape = 's32[1]{0}', space=sflag, size = 0x4, scoped, tag = 'scoped memory for tpu_custom_call.1']
    #allocation13 [shape = 'u8[65536]{0}', space=vmem, size = 0x10000, scoped, tag = 'input window, operand 11, single buffered']
    #allocation14 [shape = 'u8[32768]{0}', space=vmem, size = 0x8000, scoped, tag = 'input window, operand 13, single buffered']
    #allocation15 [shape = 's32[1]{0}', space=sflag, size = 0x4, scoped, tag = 'scoped memory for tpu_custom_call.1']
    #allocation16 [shape = 'u8[8192]{0}', space=vmem, size = 0x2000, scoped, tag = 'output window, operand 0']
    %20 = vsyncpa [#allocation3], 0
    %s21 = scalar_lea.sflag [#allocation3], 1
    %22 = vsyncpa %s21, 0
    %23 = vsyncpa [#allocation6], 0
    %s24 = scalar_lea.sflag [#allocation6], 1
    %25 = vsyncpa %s24, 0
    %26 = vsyncpa [#allocation9], 0
    %27 = vsyncpa [#allocation12], 0
    %28 = vsyncpa [#allocation15], 0
    %29 = vsyncpa [#allocation4], 0
    %s30 = scalar_lea.sflag [#allocation4], 1
    %31 = vsyncpa %s30, 0
    loop: start=0, step=1, limit=4
    $region2: #{tpu_custom_call.1} parent=1 // loop_pre_header
      _
    $region3: #{tpu_custom_call.1} parent=1 // loop_header
      %s33 = sphi 0, %s37
      %p34 = scmp.ge.s32.totalorder %s33, 4
      %s43 = sphi 0, %s45
      %s46 = sphi 0, %s43
      %s47 = sphi 0, %s46
      %s63 = sphi 0, %s47
      %s69 = sphi 0, %s71
      %s72 = sphi 0, %s69
      %s73 = sphi 0, %s72
      %s89 = sphi 0, %s73
      %s95 = sphi 0, %s97
      %s98 = sphi 0, %s95
      %s99 = sphi 0, %s98
      %s115 = sphi 0, %s99
      %s119 = sphi 0, %s119
      %s121 = sphi 0, %s119
      %s122 = sphi 0, %s121
      %s136 = sphi 0, %s122
      %s140 = sphi 0, %s140
      %s142 = sphi 0, %s140
      %s143 = sphi 0, %s142
      %s157 = sphi 0, %s143
      %s161 = sphi 0, %s161
      %s163 = sphi 0, %s161
      %s164 = sphi 0, %s163
      %s178 = sphi 0, %s164
      %s182 = sphi 0, %s182
      %s184 = sphi 0, %s182
      %s185 = sphi 0, %s184
      %s199 = sphi 0, %s185
      %s203 = sphi 0, %s203
      %s205 = sphi 0, %s203
      %s206 = sphi 0, %s205
      %s220 = sphi 0, %s206
      %s224 = sphi 0, %s224
      %s226 = sphi 0, %s224
      %s227 = sphi 0, %s226
      %s241 = sphi 0, %s227
      %s245 = sphi 0, %s245
      %s247 = sphi 0, %s245
      %s248 = sphi 0, %s247
      %s262 = sphi 0, %s248
      %s266 = sphi 0, %s266
      %s268 = sphi 0, %s266
      %s269 = sphi 0, %s268
      %s283 = sphi 0, %s269
      %s287 = sphi 0, %s287
      %s289 = sphi 0, %s287
      %s290 = sphi 0, %s289
      %s304 = sphi 0, %s290
      %s308 = sphi 0, %s308
      %s310 = sphi 0, %s308
      %s311 = sphi 0, %s310
      %s325 = sphi 0, %s311
      %s329 = sphi 0, %s329
      %s331 = sphi 0, %s329
      %s332 = sphi 0, %s331
      %s346 = sphi 0, %s332
      %s350 = sphi 0, %s350
      %s352 = sphi 0, %s350
      %s353 = sphi 0, %s352
      %s367 = sphi 0, %s353
      %s373 = sphi 0, %s375
      %s376 = sphi 0, %s373
      %s377 = sphi 0, %s376
      %s393 = sphi 0, %s377
    $region4: #{tpu_custom_call.1} parent=1 // loop_header_branch
      %36 = sbr.rel (%p34) target = $region8
    $region5: #{tpu_custom_call.1} parent=1 // loop_body
      %s38 = ssub.s32 %s33, 1
      %s39 = ssub.s32 %s33, 2
      %s40 = sadd.s32 %s33, 1
      %s41 = ssub.s32 %s33, %s40
      %p42 = scmp.eq.s32.totalorder %s41, 0
      %s44 = sadd.s32 %s43, 1
      %s45 = scalar_select %p42, %s43, %s44
      %p48 = pneg %p42
      %p49 = scmp.eq.s32.totalorder %s33, 1
      %p50 = por %p48, %p49
      %p51 = scmp.ne.s32.totalorder %s43, %s46
      %p52 = scmp.eq.s32.totalorder %s33, 0
      %p53 = por %p51, %p52
      %p54 = scmp.ne.s32.totalorder %s43, %s46
      %p55 = scmp.eq.s32.totalorder %s38, 1
      %p56 = por %p54, %p55
      %p57 = scmp.ne.s32.totalorder %s46, %s47
      %p58 = scmp.eq.s32.totalorder %s38, 0
      %p59 = por %p57, %p58
      %p60 = scmp.ne.s32.totalorder %s46, %s47
      %p61 = scmp.eq.s32.totalorder %s39, 1
      %p62 = por %p60, %p61
      %p64 = scmp.ne.s32.totalorder %s47, %s63
      %p65 = scmp.eq.s32.totalorder %s39, 0
      %p66 = por %p64, %p65
      %s67 = ssub.s32 %s33, %s40
      %p68 = scmp.eq.s32.totalorder %s67, 0
      %s70 = sadd.s32 %s69, 1
      %s71 = scalar_select %p68, %s69, %s70
      %p74 = pneg %p68
      %p75 = scmp.eq.s32.totalorder %s33, 1
      %p76 = por %p74, %p75
      %p77 = scmp.ne.s32.totalorder %s69, %s72
      %p78 = scmp.eq.s32.totalorder %s33, 0
      %p79 = por %p77, %p78
      %p80 = scmp.ne.s32.totalorder %s69, %s72
      %p81 = scmp.eq.s32.totalorder %s38, 1
      %p82 = por %p80, %p81
      %p83 = scmp.ne.s32.totalorder %s72, %s73
      %p84 = scmp.eq.s32.totalorder %s38, 0
      %p85 = por %p83, %p84
      %p86 = scmp.ne.s32.totalorder %s72, %s73
      %p87 = scmp.eq.s32.totalorder %s39, 1
      %p88 = por %p86, %p87
      %p90 = scmp.ne.s32.totalorder %s73, %s89
      %p91 = scmp.eq.s32.totalorder %s39, 0
      %p92 = por %p90, %p91
      %s93 = ssub.s32 %s33, %s40
      %p94 = scmp.eq.s32.totalorder %s93, 0
      %s96 = sadd.s32 %s95, 1
      %s97 = scalar_select %p94, %s95, %s96
      %p100 = pneg %p94
      %p101 = scmp.eq.s32.totalorder %s33, 1
      %p102 = por %p100, %p101
      %p103 = scmp.ne.s32.totalorder %s95, %s98
      %p104 = scmp.eq.s32.totalorder %s33, 0
      %p105 = por %p103, %p104
      %p106 = scmp.ne.s32.totalorder %s95, %s98
      %p107 = scmp.eq.s32.totalorder %s38, 1
      %p108 = por %p106, %p107
      %p109 = scmp.ne.s32.totalorder %s98, %s99
      %p110 = scmp.eq.s32.totalorder %s38, 0
      %p111 = por %p109, %p110
      %p112 = scmp.ne.s32.totalorder %s98, %s99
      %p113 = scmp.eq.s32.totalorder %s39, 1
      %p114 = por %p112, %p113
      %p116 = scmp.ne.s32.totalorder %s99, %s115
      %p117 = scmp.eq.s32.totalorder %s39, 0
      %p118 = por %p116, %p117
      %s120 = sadd.s32 %s119, 1
      %p123 = scmp.eq.s32.totalorder %s33, 1
      %p124 = scmp.ne.s32.totalorder %s119, %s121
      %p125 = scmp.eq.s32.totalorder %s33, 0
      %p126 = por %p124, %p125
      %p127 = scmp.ne.s32.totalorder %s119, %s121
      %p128 = scmp.eq.s32.totalorder %s38, 1
      %p129 = por %p127, %p128
      %p130 = scmp.ne.s32.totalorder %s121, %s122
      %p131 = scmp.eq.s32.totalorder %s38, 0
      %p132 = por %p130, %p131
      %p133 = scmp.ne.s32.totalorder %s121, %s122
      %p134 = scmp.eq.s32.totalorder %s39, 1
      %p135 = por %p133, %p134
      %p137 = scmp.ne.s32.totalorder %s122, %s136
      %p138 = scmp.eq.s32.totalorder %s39, 0
      %p139 = por %p137, %p138
      %s141 = sadd.s32 %s140, 1
      %p144 = scmp.eq.s32.totalorder %s33, 1
      %p145 = scmp.ne.s32.totalorder %s140, %s142
      %p146 = scmp.eq.s32.totalorder %s33, 0
      %p147 = por %p145, %p146
      %p148 = scmp.ne.s32.totalorder %s140, %s142
      %p149 = scmp.eq.s32.totalorder %s38, 1
      %p150 = por %p148, %p149
      %p151 = scmp.ne.s32.totalorder %s142, %s143
      %p152 = scmp.eq.s32.totalorder %s38, 0
      %p153 = por %p151, %p152
      %p154 = scmp.ne.s32.totalorder %s142, %s143
      %p155 = scmp.eq.s32.totalorder %s39, 1
      %p156 = por %p154, %p155
      %p158 = scmp.ne.s32.totalorder %s143, %s157
      %p159 = scmp.eq.s32.totalorder %s39, 0
      %p160 = por %p158, %p159
      %s162 = sadd.s32 %s161, 1
      %p165 = scmp.eq.s32.totalorder %s33, 1
      %p166 = scmp.ne.s32.totalorder %s161, %s163
      %p167 = scmp.eq.s32.totalorder %s33, 0
      %p168 = por %p166, %p167
      %p169 = scmp.ne.s32.totalorder %s161, %s163
      %p170 = scmp.eq.s32.totalorder %s38, 1
      %p171 = por %p169, %p170
      %p172 = scmp.ne.s32.totalorder %s163, %s164
      %p173 = scmp.eq.s32.totalorder %s38, 0
      %p174 = por %p172, %p173
      %p175 = scmp.ne.s32.totalorder %s163, %s164
      %p176 = scmp.eq.s32.totalorder %s39, 1
      %p177 = por %p175, %p176
      %p179 = scmp.ne.s32.totalorder %s164, %s178
      %p180 = scmp.eq.s32.totalorder %s39, 0
      %p181 = por %p179, %p180
      %s183 = sadd.s32 %s182, 1
      %p186 = scmp.eq.s32.totalorder %s33, 1
      %p187 = scmp.ne.s32.totalorder %s182, %s184
      %p188 = scmp.eq.s32.totalorder %s33, 0
      %p189 = por %p187, %p188
      %p190 = scmp.ne.s32.totalorder %s182, %s184
      %p191 = scmp.eq.s32.totalorder %s38, 1
      %p192 = por %p190, %p191
      %p193 = scmp.ne.s32.totalorder %s184, %s185
      %p194 = scmp.eq.s32.totalorder %s38, 0
      %p195 = por %p193, %p194
      %p196 = scmp.ne.s32.totalorder %s184, %s185
      %p197 = scmp.eq.s32.totalorder %s39, 1
      %p198 = por %p196, %p197
      %p200 = scmp.ne.s32.totalorder %s185, %s199
      %p201 = scmp.eq.s32.totalorder %s39, 0
      %p202 = por %p200, %p201
      %s204 = sadd.s32 %s203, 1
      %p207 = scmp.eq.s32.totalorder %s33, 1
      %p208 = scmp.ne.s32.totalorder %s203, %s205
      %p209 = scmp.eq.s32.totalorder %s33, 0
      %p210 = por %p208, %p209
      %p211 = scmp.ne.s32.totalorder %s203, %s205
      %p212 = scmp.eq.s32.totalorder %s38, 1
      %p213 = por %p211, %p212
      %p214 = scmp.ne.s32.totalorder %s205, %s206
      %p215 = scmp.eq.s32.totalorder %s38, 0
      %p216 = por %p214, %p215
      %p217 = scmp.ne.s32.totalorder %s205, %s206
      %p218 = scmp.eq.s32.totalorder %s39, 1
      %p219 = por %p217, %p218
      %p221 = scmp.ne.s32.totalorder %s206, %s220
      %p222 = scmp.eq.s32.totalorder %s39, 0
      %p223 = por %p221, %p222
      %s225 = sadd.s32 %s224, 1
      %p228 = scmp.eq.s32.totalorder %s33, 1
      %p229 = scmp.ne.s32.totalorder %s224, %s226
      %p230 = scmp.eq.s32.totalorder %s33, 0
      %p231 = por %p229, %p230
      %p232 = scmp.ne.s32.totalorder %s224, %s226
      %p233 = scmp.eq.s32.totalorder %s38, 1
      %p234 = por %p232, %p233
      %p235 = scmp.ne.s32.totalorder %s226, %s227
      %p236 = scmp.eq.s32.totalorder %s38, 0
      %p237 = por %p235, %p236
      %p238 = scmp.ne.s32.totalorder %s226, %s227
      %p239 = scmp.eq.s32.totalorder %s39, 1
      %p240 = por %p238, %p239
      %p242 = scmp.ne.s32.totalorder %s227, %s241
      %p243 = scmp.eq.s32.totalorder %s39, 0
      %p244 = por %p242, %p243
      %s246 = sadd.s32 %s245, 1
      %p249 = scmp.eq.s32.totalorder %s33, 1
      %p250 = scmp.ne.s32.totalorder %s245, %s247
      %p251 = scmp.eq.s32.totalorder %s33, 0
      %p252 = por %p250, %p251
      %p253 = scmp.ne.s32.totalorder %s245, %s247
      %p254 = scmp.eq.s32.totalorder %s38, 1
      %p255 = por %p253, %p254
      %p256 = scmp.ne.s32.totalorder %s247, %s248
      %p257 = scmp.eq.s32.totalorder %s38, 0
      %p258 = por %p256, %p257
      %p259 = scmp.ne.s32.totalorder %s247, %s248
      %p260 = scmp.eq.s32.totalorder %s39, 1
      %p261 = por %p259, %p260
      %p263 = scmp.ne.s32.totalorder %s248, %s262
      %p264 = scmp.eq.s32.totalorder %s39, 0
      %p265 = por %p263, %p264
      %s267 = sadd.s32 %s266, 1
      %p270 = scmp.eq.s32.totalorder %s33, 1
      %p271 = scmp.ne.s32.totalorder %s266, %s268
      %p272 = scmp.eq.s32.totalorder %s33, 0
      %p273 = por %p271, %p272
      %p274 = scmp.ne.s32.totalorder %s266, %s268
      %p275 = scmp.eq.s32.totalorder %s38, 1
      %p276 = por %p274, %p275
      %p277 = scmp.ne.s32.totalorder %s268, %s269
      %p278 = scmp.eq.s32.totalorder %s38, 0
      %p279 = por %p277, %p278
      %p280 = scmp.ne.s32.totalorder %s268, %s269
      %p281 = scmp.eq.s32.totalorder %s39, 1
      %p282 = por %p280, %p281
      %p284 = scmp.ne.s32.totalorder %s269, %s283
      %p285 = scmp.eq.s32.totalorder %s39, 0
      %p286 = por %p284, %p285
      %s288 = sadd.s32 %s287, 1
      %p291 = scmp.eq.s32.totalorder %s33, 1
      %p292 = scmp.ne.s32.totalorder %s287, %s289
      %p293 = scmp.eq.s32.totalorder %s33, 0
      %p294 = por %p292, %p293
      %p295 = scmp.ne.s32.totalorder %s287, %s289
      %p296 = scmp.eq.s32.totalorder %s38, 1
      %p297 = por %p295, %p296
      %p298 = scmp.ne.s32.totalorder %s289, %s290
      %p299 = scmp.eq.s32.totalorder %s38, 0
      %p300 = por %p298, %p299
      %p301 = scmp.ne.s32.totalorder %s289, %s290
      %p302 = scmp.eq.s32.totalorder %s39, 1
      %p303 = por %p301, %p302
      %p305 = scmp.ne.s32.totalorder %s290, %s304
      %p306 = scmp.eq.s32.totalorder %s39, 0
      %p307 = por %p305, %p306
      %s309 = sadd.s32 %s308, 1
      %p312 = scmp.eq.s32.totalorder %s33, 1
      %p313 = scmp.ne.s32.totalorder %s308, %s310
      %p314 = scmp.eq.s32.totalorder %s33, 0
      %p315 = por %p313, %p314
      %p316 = scmp.ne.s32.totalorder %s308, %s310
      %p317 = scmp.eq.s32.totalorder %s38, 1
      %p318 = por %p316, %p317
      %p319 = scmp.ne.s32.totalorder %s310, %s311
      %p320 = scmp.eq.s32.totalorder %s38, 0
      %p321 = por %p319, %p320
      %p322 = scmp.ne.s32.totalorder %s310, %s311
      %p323 = scmp.eq.s32.totalorder %s39, 1
      %p324 = por %p322, %p323
      %p326 = scmp.ne.s32.totalorder %s311, %s325
      %p327 = scmp.eq.s32.totalorder %s39, 0
      %p328 = por %p326, %p327
      %s330 = sadd.s32 %s329, 1
      %p333 = scmp.eq.s32.totalorder %s33, 1
      %p334 = scmp.ne.s32.totalorder %s329, %s331
      %p335 = scmp.eq.s32.totalorder %s33, 0
      %p336 = por %p334, %p335
      %p337 = scmp.ne.s32.totalorder %s329, %s331
      %p338 = scmp.eq.s32.totalorder %s38, 1
      %p339 = por %p337, %p338
      %p340 = scmp.ne.s32.totalorder %s331, %s332
      %p341 = scmp.eq.s32.totalorder %s38, 0
      %p342 = por %p340, %p341
      %p343 = scmp.ne.s32.totalorder %s331, %s332
      %p344 = scmp.eq.s32.totalorder %s39, 1
      %p345 = por %p343, %p344
      %p347 = scmp.ne.s32.totalorder %s332, %s346
      %p348 = scmp.eq.s32.totalorder %s39, 0
      %p349 = por %p347, %p348
      %s351 = sadd.s32 %s350, 1
      %p354 = scmp.eq.s32.totalorder %s33, 1
      %p355 = scmp.ne.s32.totalorder %s350, %s352
      %p356 = scmp.eq.s32.totalorder %s33, 0
      %p357 = por %p355, %p356
      %p358 = scmp.ne.s32.totalorder %s350, %s352
      %p359 = scmp.eq.s32.totalorder %s38, 1
      %p360 = por %p358, %p359
      %p361 = scmp.ne.s32.totalorder %s352, %s353
      %p362 = scmp.eq.s32.totalorder %s38, 0
      %p363 = por %p361, %p362
      %p364 = scmp.ne.s32.totalorder %s352, %s353
      %p365 = scmp.eq.s32.totalorder %s39, 1
      %p366 = por %p364, %p365
      %p368 = scmp.ne.s32.totalorder %s353, %s367
      %p369 = scmp.eq.s32.totalorder %s39, 0
      %p370 = por %p368, %p369
      %s371 = ssub.s32 %s33, %s40
      %p372 = scmp.eq.s32.totalorder %s371, 0
      %s374 = sadd.s32 %s373, 1
      %s375 = scalar_select %p372, %s373, %s374
      %p378 = pneg %p372
      %p379 = scmp.eq.s32.totalorder %s33, 1
      %p380 = por %p378, %p379
      %p381 = scmp.ne.s32.totalorder %s373, %s376
      %p382 = scmp.eq.s32.totalorder %s33, 0
      %p383 = por %p381, %p382
      %p384 = scmp.ne.s32.totalorder %s373, %s376
      %p385 = scmp.eq.s32.totalorder %s38, 1
      %p386 = por %p384, %p385
      %p387 = scmp.ne.s32.totalorder %s376, %s377
      %p388 = scmp.eq.s32.totalorder %s38, 0
      %p389 = por %p387, %p388
      %p390 = scmp.ne.s32.totalorder %s376, %s377
      %p391 = scmp.eq.s32.totalorder %s39, 1
      %p392 = por %p390, %p391
      %p394 = scmp.ne.s32.totalorder %s377, %s393
      %p395 = scmp.eq.s32.totalorder %s39, 0
      %p396 = por %p394, %p395
      %p397 = scmp.le.s32.totalorder 1, %s33
      %p398 = scmp.lt.s32.totalorder %s33, 3
      %p399 = pnand %p397, %p398
      %p400 = pneg %p399
      // Predicated region
      $region9: #{tpu_custom_call.1} parent=5 // pred_check
        _
      $region10: #{tpu_custom_call.1} parent=5 // pred_check_branch
        %402 = sbr.rel (%p399) target = $region12
      $region11: #{tpu_custom_call.1} parent=5 // pred_region
        %s403 = ssub.s32 %s33, 1
        // Predicated region
        $region13: #{tpu_custom_call.1} parent=11 // pred_check
          %p404 = pneg %p132
        $region14: #{tpu_custom_call.1} parent=11 // pred_check_branch
          %406 = sbr.rel (%p404) target = $region16
        $region15: #{tpu_custom_call.1} parent=11 // pred_region
          %s408 = ssub.s32 2048, 2048
          %409 = vsyncadd [#allocation6], %s408
          %s410 = sshll.u32 [#allocation7], 4
          %s411 = int_to_ptr.vmem [resolvable:$true] %s410
          %416 = dma.hbm_to_vmem [thread:$0]  %s3, 2048, %s411, [#allocation6], 64, 64, 4
        $region16: #{tpu_custom_call.1} parent=11 // pred_fallthru
          _
        // Predicated region
        $region17: #{tpu_custom_call.1} parent=11 // pred_check
          %p417 = pneg %p153
        $region18: #{tpu_custom_call.1} parent=11 // pred_check_branch
          %419 = sbr.rel (%p417) target = $region20
        $region19: #{tpu_custom_call.1} parent=11 // pred_region
          _
        $region20: #{tpu_custom_call.1} parent=11 // pred_fallthru
          _
        // Predicated region
        $region21: #{tpu_custom_call.1} parent=11 // pred_check
          %p420 = pneg %p174
        $region22: #{tpu_custom_call.1} parent=11 // pred_check_branch
          %422 = sbr.rel (%p420) target = $region24
        $region23: #{tpu_custom_call.1} parent=11 // pred_region
          %s424 = ssub.s32 2048, 2048
          %425 = vsyncadd [#allocation9], %s424
          %s426 = sshll.u32 [#allocation8], 4
          %s427 = int_to_ptr.vmem [resolvable:$true] %s426
          %432 = dma.hbm_to_vmem [thread:$0]  %s5, 2048, %s427, [#allocation9], 64, 64, 4
        $region24: #{tpu_custom_call.1} parent=11 // pred_fallthru
          _
        // Predicated region
        $region25: #{tpu_custom_call.1} parent=11 // pred_check
          %p433 = pneg %p195
        $region26: #{tpu_custom_call.1} parent=11 // pred_check_branch
          %435 = sbr.rel (%p433) target = $region28
        $region27: #{tpu_custom_call.1} parent=11 // pred_region
          _
        $region28: #{tpu_custom_call.1} parent=11 // pred_fallthru
          _
        // Predicated region
        $region29: #{tpu_custom_call.1} parent=11 // pred_check
          %p436 = pneg %p216
        $region30: #{tpu_custom_call.1} parent=11 // pred_check_branch
          %438 = sbr.rel (%p436) target = $region32
        $region31: #{tpu_custom_call.1} parent=11 // pred_region
          %s440 = ssub.s32 2048, 2048
          %441 = vsyncadd [#allocation9], %s440
          %s442 = sshll.u32 [#allocation10], 4
          %s443 = int_to_ptr.vmem [resolvable:$true] %s442
          %448 = dma.hbm_to_vmem [thread:$0]  %s7, 2048, %s443, [#allocation9], 64, 64, 4
        $region32: #{tpu_custom_call.1} parent=11 // pred_fallthru
          _
        // Predicated region
        $region33: #{tpu_custom_call.1} parent=11 // pred_check
          %p449 = pneg %p237
        $region34: #{tpu_custom_call.1} parent=11 // pred_check_branch
          %451 = sbr.rel (%p449) target = $region36
        $region35: #{tpu_custom_call.1} parent=11 // pred_region
          _
        $region36: #{tpu_custom_call.1} parent=11 // pred_fallthru
          _
        // Predicated region
        $region37: #{tpu_custom_call.1} parent=11 // pred_check
          %p452 = pneg %p258
        $region38: #{tpu_custom_call.1} parent=11 // pred_check_branch
          %454 = sbr.rel (%p452) target = $region40
        $region39: #{tpu_custom_call.1} parent=11 // pred_region
          %s456 = ssub.s32 4096, 4096
          %457 = vsyncadd [#allocation12], %s456
          %s458 = sshll.u32 [#allocation11], 4
          %s459 = int_to_ptr.vmem [resolvable:$true] %s458
          %464 = dma.hbm_to_vmem [thread:$0]  %s9, 4096, %s459, [#allocation12], 128, 128, 8
        $region40: #{tpu_custom_call.1} parent=11 // pred_fallthru
          _
        // Predicated region
        $region41: #{tpu_custom_call.1} parent=11 // pred_check
          %p465 = pneg %p279
        $region42: #{tpu_custom_call.1} parent=11 // pred_check_branch
          %467 = sbr.rel (%p465) target = $region44
        $region43: #{tpu_custom_call.1} parent=11 // pred_region
          _
        $region44: #{tpu_custom_call.1} parent=11 // pred_fallthru
          _
        // Predicated region
        $region45: #{tpu_custom_call.1} parent=11 // pred_check
          %p468 = pneg %p300
        $region46: #{tpu_custom_call.1} parent=11 // pred_check_branch
          %470 = sbr.rel (%p468) target = $region48
        $region47: #{tpu_custom_call.1} parent=11 // pred_region
          %s472 = ssub.s32 2048, 2048
          %473 = vsyncadd [#allocation12], %s472
          %s474 = sshll.u32 [#allocation13], 4
          %s475 = int_to_ptr.vmem [resolvable:$true] %s474
          %480 = dma.hbm_to_vmem [thread:$0]  %s11, 2048, %s475, [#allocation12], 64, 64, 4
        $region48: #{tpu_custom_call.1} parent=11 // pred_fallthru
          _
        // Predicated region
        $region49: #{tpu_custom_call.1} parent=11 // pred_check
          %p481 = pneg %p321
        $region50: #{tpu_custom_call.1} parent=11 // pred_check_branch
          %483 = sbr.rel (%p481) target = $region52
        $region51: #{tpu_custom_call.1} parent=11 // pred_region
          _
        $region52: #{tpu_custom_call.1} parent=11 // pred_fallthru
          _
        // Predicated region
        $region53: #{tpu_custom_call.1} parent=11 // pred_check
          %p484 = pneg %p342
        $region54: #{tpu_custom_call.1} parent=11 // pred_check_branch
          %486 = sbr.rel (%p484) target = $region56
        $region55: #{tpu_custom_call.1} parent=11 // pred_region
          %s488 = ssub.s32 1024, 1024
          %489 = vsyncadd [#allocation15], %s488
          %s490 = sshll.u32 [#allocation14], 4
          %s491 = int_to_ptr.vmem [resolvable:$true] %s490
          %496 = dma.hbm_to_vmem [thread:$0]  %s13, 1024, %s491, [#allocation15], 64, 64, 4
        $region56: #{tpu_custom_call.1} parent=11 // pred_fallthru
          _
        // Predicated region
        $region57: #{tpu_custom_call.1} parent=11 // pred_check
          %p497 = pneg %p363
        $region58: #{tpu_custom_call.1} parent=11 // pred_check_branch
          %499 = sbr.rel (%p497) target = $region60
        $region59: #{tpu_custom_call.1} parent=11 // pred_region
          _
        $region60: #{tpu_custom_call.1} parent=11 // pred_fallthru
          _
      $region12: #{tpu_custom_call.1} parent=5 // pred_fallthru
        _
      %p500 = scmp.lt.s32.totalorder %s33, 2
      // Predicated region
      $region61: #{tpu_custom_call.1} parent=5 // pred_check
        %p501 = pneg %p500
      $region62: #{tpu_custom_call.1} parent=5 // pred_check_branch
        %503 = sbr.rel (%p501) target = $region64
      $region63: #{tpu_custom_call.1} parent=5 // pred_region
        // Predicated region
        $region65: #{tpu_custom_call.1} parent=63 // pred_check
          %p504 = pneg %p53
        $region66: #{tpu_custom_call.1} parent=63 // pred_check_branch
          %506 = sbr.rel (%p504) target = $region68
        $region67: #{tpu_custom_call.1} parent=63 // pred_region
          %s507 = sand.u32 %s43, 1
          %s508 = scalar_lea.sflag [#allocation3], %s507
          %s509 = sand.u32 %s43, 1
          %s510 = smul.addr %s509, 4
          %s511 = scalar_lea.vmem [#allocation2], %s510
          %s513 = ssub.s32 64, 64
          %514 = vsyncadd %s508, %s513
          %s515 = smul.addr %s33, 64
          %s516 = scalar_lea.hbm %s0, %s515
          %s518 = sshll.u32 %s511, 4
          %s519 = int_to_ptr.vmem [resolvable:$true] %s518
          %521 = dma.hbm_to_vmem [thread:$0]  %s516, 64, %s519, %s508
        $region68: #{tpu_custom_call.1} parent=63 // pred_fallthru
          _
        // Predicated region
        $region69: #{tpu_custom_call.1} parent=63 // pred_check
          %p522 = pneg %p79
        $region70: #{tpu_custom_call.1} parent=63 // pred_check_branch
          %524 = sbr.rel (%p522) target = $region72
        $region71: #{tpu_custom_call.1} parent=63 // pred_region
          %p525 = scmp.lt.s32.totalorder %s33, 1
          %s526 = scalar_select %p525, %s33, 1
          %s527 = scalar_lea.vmem %s1, %s526
        $region72: #{tpu_custom_call.1} parent=63 // pred_fallthru
          _
        // Predicated region
        $region73: #{tpu_custom_call.1} parent=63 // pred_check
          %p528 = pneg %p105
        $region74: #{tpu_custom_call.1} parent=63 // pred_check_branch
          %530 = sbr.rel (%p528) target = $region76
        $region75: #{tpu_custom_call.1} parent=63 // pred_region
          %s531 = sand.u32 %s33, 1
          %s532 = scalar_lea.sflag [#allocation6], %s531
          %s533 = sand.u32 %s95, 1
          %s534 = smul.addr %s533, 4
          %s535 = scalar_lea.vmem [#allocation5], %s534
          %s537 = ssub.s32 64, 64
          %538 = vsyncadd %s532, %s537
          %s539 = smul.addr %s33, 64
          %s540 = scalar_lea.hbm %s2, %s539
          %s542 = sshll.u32 %s535, 4
          %s543 = int_to_ptr.vmem [resolvable:$true] %s542
          %545 = dma.hbm_to_vmem [thread:$0]  %s540, 64, %s543, %s532
        $region76: #{tpu_custom_call.1} parent=63 // pred_fallthru
          _
      $region64: #{tpu_custom_call.1} parent=5 // pred_fallthru
        _
      %p546 = scmp.le.s32.totalorder 1, %s33
      %p547 = scmp.lt.s32.totalorder %s33, 3
      %p548 = pnand %p546, %p547
      %p549 = pneg %p548
      // Predicated region
      $region77: #{tpu_custom_call.1} parent=5 // pred_check
        _
      $region78: #{tpu_custom_call.1} parent=5 // pred_check_branch
        %551 = sbr.rel (%p548) target = $region80
      $region79: #{tpu_custom_call.1} parent=5 // pred_region
        %s552 = ssub.s32 %s33, 1
        %s553 = sand.u32 %s46, 1
        %s554 = scalar_lea.sflag [#allocation3], %s553
        %s555 = sand.u32 %s46, 1
        %s556 = smul.addr %s555, 4
        %s557 = scalar_lea.vmem [#allocation2], %s556
        // Predicated region
        $region81: #{tpu_custom_call.1} parent=79 // pred_check
          %p558 = pneg %p59
        $region82: #{tpu_custom_call.1} parent=79 // pred_check_branch
          %560 = sbr.rel (%p558) target = $region84
        $region83: #{tpu_custom_call.1} parent=79 // pred_region
          %561 = dma.done %s554, 64
        $region84: #{tpu_custom_call.1} parent=79 // pred_fallthru
          _
        %s562 = sand.u32 %s38, 1
        %s563 = scalar_lea.sflag [#allocation6], %s562
        %s564 = sand.u32 %s98, 1
        %s565 = smul.addr %s564, 4
        %s566 = scalar_lea.vmem [#allocation5], %s565
        // Predicated region
        $region85: #{tpu_custom_call.1} parent=79 // pred_check
          %p567 = pneg %p111
        $region86: #{tpu_custom_call.1} parent=79 // pred_check_branch
          %569 = sbr.rel (%p567) target = $region88
        $region87: #{tpu_custom_call.1} parent=79 // pred_region
          %570 = dma.done %s563, 64
        $region88: #{tpu_custom_call.1} parent=79 // pred_fallthru
          _
        // Predicated region
        $region89: #{tpu_custom_call.1} parent=79 // pred_check
          %p571 = pneg %p132
        $region90: #{tpu_custom_call.1} parent=79 // pred_check_branch
          %573 = sbr.rel (%p571) target = $region92
        $region91: #{tpu_custom_call.1} parent=79 // pred_region
          %574 = dma.done [#allocation6], 2048
        $region92: #{tpu_custom_call.1} parent=79 // pred_fallthru
          _
        // Predicated region
        $region93: #{tpu_custom_call.1} parent=79 // pred_check
          %p575 = pneg %p174
        $region94: #{tpu_custom_call.1} parent=79 // pred_check_branch
          %577 = sbr.rel (%p575) target = $region96
        $region95: #{tpu_custom_call.1} parent=79 // pred_region
          %578 = dma.done [#allocation9], 2048
        $region96: #{tpu_custom_call.1} parent=79 // pred_fallthru
          _
        // Predicated region
        $region97: #{tpu_custom_call.1} parent=79 // pred_check
          %p579 = pneg %p216
        $region98: #{tpu_custom_call.1} parent=79 // pred_check_branch
          %581 = sbr.rel (%p579) target = $region100
        $region99: #{tpu_custom_call.1} parent=79 // pred_region
          %582 = dma.done [#allocation9], 2048
        $region100: #{tpu_custom_call.1} parent=79 // pred_fallthru
          _
        // Predicated region
        $region101: #{tpu_custom_call.1} parent=79 // pred_check
          %p583 = pneg %p258
        $region102: #{tpu_custom_call.1} parent=79 // pred_check_branch
          %585 = sbr.rel (%p583) target = $region104
        $region103: #{tpu_custom_call.1} parent=79 // pred_region
          %586 = dma.done [#allocation12], 4096
        $region104: #{tpu_custom_call.1} parent=79 // pred_fallthru
          _
        // Predicated region
        $region105: #{tpu_custom_call.1} parent=79 // pred_check
          %p587 = pneg %p300
        $region106: #{tpu_custom_call.1} parent=79 // pred_check_branch
          %589 = sbr.rel (%p587) target = $region108
        $region107: #{tpu_custom_call.1} parent=79 // pred_region
          %590 = dma.done [#allocation12], 2048
        $region108: #{tpu_custom_call.1} parent=79 // pred_fallthru
          _
        // Predicated region
        $region109: #{tpu_custom_call.1} parent=79 // pred_check
          %p591 = pneg %p342
        $region110: #{tpu_custom_call.1} parent=79 // pred_check_branch
          %593 = sbr.rel (%p591) target = $region112
        $region111: #{tpu_custom_call.1} parent=79 // pred_region
          %594 = dma.done [#allocation15], 1024
        $region112: #{tpu_custom_call.1} parent=79 // pred_fallthru
          _
        %s595 = sand.u32 %s46, 1
        %s596 = scalar_lea.sflag [#allocation3], %s595
        %s597 = sand.u32 %s46, 1
        %s598 = smul.addr %s597, 4
        %s599 = scalar_lea.vmem [#allocation2], %s598
        %p600 = pneg %p59
        %p601 = pneg %p56
        %p602 = scmp.lt.s32.totalorder %s38, 1
        %s603 = scalar_select %p602, %s38, 1
        %s604 = scalar_lea.vmem %s1, %s603
        %p605 = pneg %p85
        %p606 = pneg %p82
        %s607 = sand.u32 %s38, 1
        %s608 = scalar_lea.sflag [#allocation6], %s607
        %s609 = sand.u32 %s98, 1
        %s610 = smul.addr %s609, 4
        %s611 = scalar_lea.vmem [#allocation5], %s610
        %p612 = pneg %p111
        %p613 = pneg %p108
        %p614 = pneg %p132
        %p615 = pneg %p129
        %p616 = pneg %p153
        %p617 = pneg %p150
        %p618 = pneg %p174
        %p619 = pneg %p171
        %p620 = pneg %p195
        %p621 = pneg %p192
        %p622 = pneg %p216
        %p623 = pneg %p213
        %p624 = pneg %p237
        %p625 = pneg %p234
        %p626 = pneg %p258
        %p627 = pneg %p255
        %p628 = pneg %p279
        %p629 = pneg %p276
        %p630 = pneg %p300
        %p631 = pneg %p297
        %p632 = pneg %p321
        %p633 = pneg %p318
        %p634 = pneg %p342
        %p635 = pneg %p339
        %p636 = pneg %p363
        %p637 = pneg %p360
        %p638 = pneg %p389
        %p639 = pneg %p386
        %s640 = sand.u32 %s376, 1
        %s641 = scalar_lea.sflag [#allocation4], %s640
        %s642 = sand.u32 %s376, 1
        %s643 = smul.addr %s642, 8
        %s644 = scalar_lea.vmem [#allocation16], %s643
        %p645 = scmp.lt.s32.totalorder %s38, 1
        %s646 = scalar_select %p645, %s38, 1
        %s647 = scalar_lea.vmem %s1, %s646
        %v649 = vld [vmem:[%s557] sm:$0xf]
        %v650 = vld [vmem:[%s566] sm:$0xf]
        %vm651 = vcmask 64512
        %v653 = vsel %vm651, %v649, 0
        %vm655 = vcmask 1043456
        %v657 = vsel %vm655, %v650, 0
        %659 = vmatprep.subr.bf16.mxu0 0
        %660 = vmatpush1.bf16.msra.mxu0 %v657
        %661 = vmatprep.subr.bf16.mxu0 0
        %662 = vmatpush1.bf16.msra.mxu0 0
        %663 = vmatprep.subr.bf16.mxu0 0
        %664 = vmatpush1.bf16.msra.mxu0 0
        %665 = vmatprep.subr.bf16.mxu0 0
        %666 = vmatpush1.bf16.msra.mxu0 0
        %667 = vmatprep.subr.bf16.mxu0 0
        %668 = vmatpush1.bf16.msra.mxu0 0
        %669 = vmatprep.subr.bf16.mxu0 0
        %670 = vmatpush1.bf16.msra.mxu0 0
        %671 = vmatprep.subr.bf16.mxu0 0
        %672 = vmatpush1.bf16.msra.mxu0 0
        %673 = vmatprep.subr.bf16.mxu0 0
        %674 = vmatpush1.bf16.msra.mxu0 0
        %675 = vmatprep.subr.bf16.mxu0 0
        %676 = vmatpush1.bf16.msra.mxu0 0
        %677 = vmatprep.subr.bf16.mxu0 0
        %678 = vmatpush1.bf16.msra.mxu0 0
        %679 = vmatprep.subr.bf16.mxu0 0
        %680 = vmatpush1.bf16.msra.mxu0 0
        %681 = vmatprep.subr.bf16.mxu0 0
        %682 = vmatpush1.bf16.msra.mxu0 0
        %683 = vmatprep.subr.bf16.mxu0 0
        %684 = vmatpush1.bf16.msra.mxu0 0
        %685 = vmatprep.subr.bf16.mxu0 0
        %686 = vmatpush1.bf16.msra.mxu0 0
        %687 = vmatprep.subr.bf16.mxu0 0
        %688 = vmatpush1.bf16.msra.mxu0 0
        %689 = vmatprep.subr.bf16.mxu0 0
        %690 = vmatpush1.bf16.msra.mxu0 0
        %691 = vmatprep.mubr.bf16.mxu0 0
        %692 = vmatmul.mubr.bf16.gmra.mrb[0].mxu0 %v653
        %v693 = vpop.f32.mrb[0].mxu0
        %v694 = vadd.f32 0.0, %v693
        %v695 = vpop.f32.mrb[0].mxu0
        %v696 = vpop.f32.mrb[0].mxu0
        %v697 = vpop.f32.mrb[0].mxu0
        %698 = vdwg.mxu0
        %v699 = vpack.c.bf16 %v694, %v694
        %v700 = vld [vmem:[#allocation7] sm:$0xf]
        %v701 = vld [vmem:[#allocation7 + $0x4] sm:$0xf]
        %v702 = vld [vmem:[#allocation7 + $0x8] sm:$0xf]
        %v703 = vld [vmem:[#allocation7 + $0xc] sm:$0xf]
        %v704 = vld [vmem:[#allocation7 + $0x10] sm:$0xf]
        %v705 = vld [vmem:[#allocation7 + $0x14] sm:$0xf]
        %v706 = vld [vmem:[#allocation7 + $0x18] sm:$0xf]
        %v707 = vld [vmem:[#allocation7 + $0x1c] sm:$0xf]
        %v708 = vld [vmem:[#allocation7 + $0x20] sm:$0xf]
        %v709 = vld [vmem:[#allocation7 + $0x24] sm:$0xf]
        %v710 = vld [vmem:[#allocation7 + $0x28] sm:$0xf]
        %v711 = vld [vmem:[#allocation7 + $0x2c] sm:$0xf]
        %v712 = vld [vmem:[#allocation7 + $0x30] sm:$0xf]
        %v713 = vld [vmem:[#allocation7 + $0x34] sm:$0xf]
        %v714 = vld [vmem:[#allocation7 + $0x38] sm:$0xf]
        %v715 = vld [vmem:[#allocation7 + $0x3c] sm:$0xf]
        %v716 = vld [vmem:[#allocation7 + $0x40] sm:$0xf]
        %v717 = vld [vmem:[#allocation7 + $0x44] sm:$0xf]
        %v718 = vld [vmem:[#allocation7 + $0x48] sm:$0xf]
        %v719 = vld [vmem:[#allocation7 + $0x4c] sm:$0xf]
        %v720 = vld [vmem:[#allocation7 + $0x50] sm:$0xf]
        %v721 = vld [vmem:[#allocation7 + $0x54] sm:$0xf]
        %v722 = vld [vmem:[#allocation7 + $0x58] sm:$0xf]
        %v723 = vld [vmem:[#allocation7 + $0x5c] sm:$0xf]
        %v724 = vld [vmem:[#allocation7 + $0x60] sm:$0xf]
        %v725 = vld [vmem:[#allocation7 + $0x64] sm:$0xf]
        %v726 = vld [vmem:[#allocation7 + $0x68] sm:$0xf]
        %v727 = vld [vmem:[#allocation7 + $0x6c] sm:$0xf]
        %v728 = vld [vmem:[#allocation7 + $0x70] sm:$0xf]
        %v729 = vld [vmem:[#allocation7 + $0x74] sm:$0xf]
        %v730 = vld [vmem:[#allocation7 + $0x78] sm:$0xf]
        %v731 = vld [vmem:[#allocation7 + $0x7c] sm:$0xf]
        %v732 = vld [vmem:[%s4] sm:$0x1]
        %v734 = vlaneseq
        %v735 = vshrl.u32 %v734, 7
        %v736 = vsub.s32 0, %v735
        %v737 = vrot.slane %v732, %v736
        %v771 = vunpack.c.l.b16 %v700
        %v772 = vunpack.c.l.b16 %v701
        %v773 = vunpack.c.l.b16 %v702
        %v774 = vunpack.c.l.b16 %v703
        %v775 = vunpack.c.l.b16 %v704
        %v776 = vunpack.c.l.b16 %v705
        %v777 = vunpack.c.l.b16 %v706
        %v778 = vunpack.c.l.b16 %v707
        %v779 = vunpack.c.l.b16 %v708
        %v780 = vunpack.c.l.b16 %v709
        %v781 = vunpack.c.l.b16 %v710
        %v782 = vunpack.c.l.b16 %v711
        %v783 = vunpack.c.l.b16 %v712
        %v784 = vunpack.c.l.b16 %v713
        %v785 = vunpack.c.l.b16 %v714
        %v786 = vunpack.c.l.b16 %v715
        %v787 = vunpack.c.l.b16 %v716
        %v788 = vunpack.c.l.b16 %v717
        %v789 = vunpack.c.l.b16 %v718
        %v790 = vunpack.c.l.b16 %v719
        %v791 = vunpack.c.l.b16 %v720
        %v792 = vunpack.c.l.b16 %v721
        %v793 = vunpack.c.l.b16 %v722
        %v794 = vunpack.c.l.b16 %v723
        %v795 = vunpack.c.l.b16 %v724
        %v796 = vunpack.c.l.b16 %v725
        %v797 = vunpack.c.l.b16 %v726
        %v798 = vunpack.c.l.b16 %v727
        %v799 = vunpack.c.l.b16 %v728
        %v800 = vunpack.c.l.b16 %v729
        %v801 = vunpack.c.l.b16 %v730
        %v802 = vunpack.c.l.b16 %v731
        %v803 = vpack.c.b16 %v772, %v771
        %v804 = vpack.c.b16 %v774, %v773
        %v805 = vpack.c.b16 %v776, %v775
        %v806 = vpack.c.b16 %v778, %v777
        %v807 = vpack.c.b16 %v780, %v779
        %v808 = vpack.c.b16 %v782, %v781
        %v809 = vpack.c.b16 %v784, %v783
        %v810 = vpack.c.b16 %v786, %v785
        %v811 = vpack.c.b16 %v788, %v787
        %v812 = vpack.c.b16 %v790, %v789
        %v813 = vpack.c.b16 %v792, %v791
        %v814 = vpack.c.b16 %v794, %v793
        %v815 = vpack.c.b16 %v796, %v795
        %v816 = vpack.c.b16 %v798, %v797
        %v817 = vpack.c.b16 %v800, %v799
        %v818 = vpack.c.b16 %v802, %v801
        %835 = vmatprep.subr.bf16.mxu0 0
        %836 = vmatpush1.bf16.msra.mxu0 %v803
        %837 = vmatprep.subr.bf16.mxu0 0
        %838 = vmatpush1.bf16.msra.mxu0 %v804
        %839 = vmatprep.subr.bf16.mxu0 0
        %840 = vmatpush1.bf16.msra.mxu0 %v805
        %841 = vmatprep.subr.bf16.mxu0 0
        %842 = vmatpush1.bf16.msra.mxu0 %v806
        %843 = vmatprep.subr.bf16.mxu0 0
        %844 = vmatpush1.bf16.msra.mxu0 %v807
        %845 = vmatprep.subr.bf16.mxu0 0
        %846 = vmatpush1.bf16.msra.mxu0 %v808
        %847 = vmatprep.subr.bf16.mxu0 0
        %848 = vmatpush1.bf16.msra.mxu0 %v809
        %849 = vmatprep.subr.bf16.mxu0 0
        %850 = vmatpush1.bf16.msra.mxu0 %v810
        %851 = vmatprep.subr.bf16.mxu0 0
        %852 = vmatpush1.bf16.msra.mxu0 %v811
        %853 = vmatprep.subr.bf16.mxu0 0
        %854 = vmatpush1.bf16.msra.mxu0 %v812
        %855 = vmatprep.subr.bf16.mxu0 0
        %856 = vmatpush1.bf16.msra.mxu0 %v813
        %857 = vmatprep.subr.bf16.mxu0 0
        %858 = vmatpush1.bf16.msra.mxu0 %v814
        %859 = vmatprep.subr.bf16.mxu0 0
        %860 = vmatpush1.bf16.msra.mxu0 %v815
        %861 = vmatprep.subr.bf16.mxu0 0
        %862 = vmatpush1.bf16.msra.mxu0 %v816
        %863 = vmatprep.subr.bf16.mxu0 0
        %864 = vmatpush1.bf16.msra.mxu0 %v817
        %865 = vmatprep.subr.bf16.mxu0 0
        %866 = vmatpush1.bf16.msra.mxu0 %v818
        %867 = vmatprep.mubr.bf16.mxu0 %v650
        %868 = vmatmul.mubr.bf16.gmra.mrb[0].mxu0 %v699
        %v869 = vpop.f32.mrb[0].mxu0
        %v870 = vadd.f32 %v737, %v869
        %v871 = vpop.f32.mrb[0].mxu0
        %v872 = vpop.f32.mrb[0].mxu0
        %v873 = vpop.f32.mrb[0].mxu0
        %874 = vdwg.mxu0
        %v875 = vmax.f32 %v870, 0.0
        %v876 = vpack.c.bf16 %v875, %v875
        %v878 = vsel %vm655, %v876, 0
        %880 = vmatprep.subr.bf16.mxu0 0
        %881 = vmatpush1.bf16.msra.mxu0 %v878
        %882 = vmatprep.subr.bf16.mxu0 0
        %883 = vmatpush1.bf16.msra.mxu0 0
        %884 = vmatprep.subr.bf16.mxu0 0
        %885 = vmatpush1.bf16.msra.mxu0 0
        %886 = vmatprep.subr.bf16.mxu0 0
        %887 = vmatpush1.bf16.msra.mxu0 0
        %888 = vmatprep.subr.bf16.mxu0 0
        %889 = vmatpush1.bf16.msra.mxu0 0
        %890 = vmatprep.subr.bf16.mxu0 0
        %891 = vmatpush1.bf16.msra.mxu0 0
        %892 = vmatprep.subr.bf16.mxu0 0
        %893 = vmatpush1.bf16.msra.mxu0 0
        %894 = vmatprep.subr.bf16.mxu0 0
        %895 = vmatpush1.bf16.msra.mxu0 0
        %896 = vmatprep.subr.bf16.mxu0 0
        %897 = vmatpush1.bf16.msra.mxu0 0
        %898 = vmatprep.subr.bf16.mxu0 0
        %899 = vmatpush1.bf16.msra.mxu0 0
        %900 = vmatprep.subr.bf16.mxu0 0
        %901 = vmatpush1.bf16.msra.mxu0 0
        %902 = vmatprep.subr.bf16.mxu0 0
        %903 = vmatpush1.bf16.msra.mxu0 0
        %904 = vmatprep.subr.bf16.mxu0 0
        %905 = vmatpush1.bf16.msra.mxu0 0
        %906 = vmatprep.subr.bf16.mxu0 0
        %907 = vmatpush1.bf16.msra.mxu0 0
        %908 = vmatprep.subr.bf16.mxu0 0
        %909 = vmatpush1.bf16.msra.mxu0 0
        %910 = vmatprep.subr.bf16.mxu0 0
        %911 = vmatpush1.bf16.msra.mxu0 0
        %912 = vmatprep.mubr.bf16.mxu0 0
        %913 = vmatmul.mubr.bf16.gmra.mrb[0].mxu0 %v653
        %v914 = vpop.f32.mrb[0].mxu0
        %v915 = vadd.f32 0.0, %v914
        %v916 = vpop.f32.mrb[0].mxu0
        %v917 = vpop.f32.mrb[0].mxu0
        %v918 = vpop.f32.mrb[0].mxu0
        %919 = vdwg.mxu0
        %v920 = vpack.c.bf16 %v915, %v915
        %v921 = vld [vmem:[#allocation8] sm:$0xf]
        %v922 = vld [vmem:[#allocation8 + $0x4] sm:$0xf]
        %v923 = vld [vmem:[#allocation8 + $0x8] sm:$0xf]
        %v924 = vld [vmem:[#allocation8 + $0xc] sm:$0xf]
        %v925 = vld [vmem:[#allocation8 + $0x10] sm:$0xf]
        %v926 = vld [vmem:[#allocation8 + $0x14] sm:$0xf]
        %v927 = vld [vmem:[#allocation8 + $0x18] sm:$0xf]
        %v928 = vld [vmem:[#allocation8 + $0x1c] sm:$0xf]
        %v929 = vld [vmem:[#allocation8 + $0x20] sm:$0xf]
        %v930 = vld [vmem:[#allocation8 + $0x24] sm:$0xf]
        %v931 = vld [vmem:[#allocation8 + $0x28] sm:$0xf]
        %v932 = vld [vmem:[#allocation8 + $0x2c] sm:$0xf]
        %v933 = vld [vmem:[#allocation8 + $0x30] sm:$0xf]
        %v934 = vld [vmem:[#allocation8 + $0x34] sm:$0xf]
        %v935 = vld [vmem:[#allocation8 + $0x38] sm:$0xf]
        %v936 = vld [vmem:[#allocation8 + $0x3c] sm:$0xf]
        %v937 = vld [vmem:[#allocation8 + $0x40] sm:$0xf]
        %v938 = vld [vmem:[#allocation8 + $0x44] sm:$0xf]
        %v939 = vld [vmem:[#allocation8 + $0x48] sm:$0xf]
        %v940 = vld [vmem:[#allocation8 + $0x4c] sm:$0xf]
        %v941 = vld [vmem:[#allocation8 + $0x50] sm:$0xf]
        %v942 = vld [vmem:[#allocation8 + $0x54] sm:$0xf]
        %v943 = vld [vmem:[#allocation8 + $0x58] sm:$0xf]
        %v944 = vld [vmem:[#allocation8 + $0x5c] sm:$0xf]
        %v945 = vld [vmem:[#allocation8 + $0x60] sm:$0xf]
        %v946 = vld [vmem:[#allocation8 + $0x64] sm:$0xf]
        %v947 = vld [vmem:[#allocation8 + $0x68] sm:$0xf]
        %v948 = vld [vmem:[#allocation8 + $0x6c] sm:$0xf]
        %v949 = vld [vmem:[#allocation8 + $0x70] sm:$0xf]
        %v950 = vld [vmem:[#allocation8 + $0x74] sm:$0xf]
        %v951 = vld [vmem:[#allocation8 + $0x78] sm:$0xf]
        %v952 = vld [vmem:[#allocation8 + $0x7c] sm:$0xf]
        %v953 = vld [vmem:[%s6] sm:$0x1]
        %v955 = vlaneseq
        %v956 = vshrl.u32 %v955, 7
        %v957 = vsub.s32 0, %v956
        %v958 = vrot.slane %v953, %v957
        %v992 = vunpack.c.l.b16 %v921
        %v993 = vunpack.c.l.b16 %v922
        %v994 = vunpack.c.l.b16 %v923
        %v995 = vunpack.c.l.b16 %v924
        %v996 = vunpack.c.l.b16 %v925
        %v997 = vunpack.c.l.b16 %v926
        %v998 = vunpack.c.l.b16 %v927
        %v999 = vunpack.c.l.b16 %v928
        %v1000 = vunpack.c.l.b16 %v929
        %v1001 = vunpack.c.l.b16 %v930
        %v1002 = vunpack.c.l.b16 %v931
        %v1003 = vunpack.c.l.b16 %v932
        %v1004 = vunpack.c.l.b16 %v933
        %v1005 = vunpack.c.l.b16 %v934
        %v1006 = vunpack.c.l.b16 %v935
        %v1007 = vunpack.c.l.b16 %v936
        %v1008 = vunpack.c.l.b16 %v937
        %v1009 = vunpack.c.l.b16 %v938
        %v1010 = vunpack.c.l.b16 %v939
        %v1011 = vunpack.c.l.b16 %v940
        %v1012 = vunpack.c.l.b16 %v941
        %v1013 = vunpack.c.l.b16 %v942
        %v1014 = vunpack.c.l.b16 %v943
        %v1015 = vunpack.c.l.b16 %v944
        %v1016 = vunpack.c.l.b16 %v945
        %v1017 = vunpack.c.l.b16 %v946
        %v1018 = vunpack.c.l.b16 %v947
        %v1019 = vunpack.c.l.b16 %v948
        %v1020 = vunpack.c.l.b16 %v949
        %v1021 = vunpack.c.l.b16 %v950
        %v1022 = vunpack.c.l.b16 %v951
        %v1023 = vunpack.c.l.b16 %v952
        %v1024 = vpack.c.b16 %v993, %v992
        %v1025 = vpack.c.b16 %v995, %v994
        %v1026 = vpack.c.b16 %v997, %v996
        %v1027 = vpack.c.b16 %v999, %v998
        %v1028 = vpack.c.b16 %v1001, %v1000
        %v1029 = vpack.c.b16 %v1003, %v1002
        %v1030 = vpack.c.b16 %v1005, %v1004
        %v1031 = vpack.c.b16 %v1007, %v1006
        %v1032 = vpack.c.b16 %v1009, %v1008
        %v1033 = vpack.c.b16 %v1011, %v1010
        %v1034 = vpack.c.b16 %v1013, %v1012
        %v1035 = vpack.c.b16 %v1015, %v1014
        %v1036 = vpack.c.b16 %v1017, %v1016
        %v1037 = vpack.c.b16 %v1019, %v1018
        %v1038 = vpack.c.b16 %v1021, %v1020
        %v1039 = vpack.c.b16 %v1023, %v1022
        %1056 = vmatprep.subr.bf16.mxu0 0
        %1057 = vmatpush1.bf16.msra.mxu0 %v1024
        %1058 = vmatprep.subr.bf16.mxu0 0
        %1059 = vmatpush1.bf16.msra.mxu0 %v1025
        %1060 = vmatprep.subr.bf16.mxu0 0
        %1061 = vmatpush1.bf16.msra.mxu0 %v1026
        %1062 = vmatprep.subr.bf16.mxu0 0
        %1063 = vmatpush1.bf16.msra.mxu0 %v1027
        %1064 = vmatprep.subr.bf16.mxu0 0
        %1065 = vmatpush1.bf16.msra.mxu0 %v1028
        %1066 = vmatprep.subr.bf16.mxu0 0
        %1067 = vmatpush1.bf16.msra.mxu0 %v1029
        %1068 = vmatprep.subr.bf16.mxu0 0
        %1069 = vmatpush1.bf16.msra.mxu0 %v1030
        %1070 = vmatprep.subr.bf16.mxu0 0
        %1071 = vmatpush1.bf16.msra.mxu0 %v1031
        %1072 = vmatprep.subr.bf16.mxu0 0
        %1073 = vmatpush1.bf16.msra.mxu0 %v1032
        %1074 = vmatprep.subr.bf16.mxu0 0
        %1075 = vmatpush1.bf16.msra.mxu0 %v1033
        %1076 = vmatprep.subr.bf16.mxu0 0
        %1077 = vmatpush1.bf16.msra.mxu0 %v1034
        %1078 = vmatprep.subr.bf16.mxu0 0
        %1079 = vmatpush1.bf16.msra.mxu0 %v1035
        %1080 = vmatprep.subr.bf16.mxu0 0
        %1081 = vmatpush1.bf16.msra.mxu0 %v1036
        %1082 = vmatprep.subr.bf16.mxu0 0
        %1083 = vmatpush1.bf16.msra.mxu0 %v1037
        %1084 = vmatprep.subr.bf16.mxu0 0
        %1085 = vmatpush1.bf16.msra.mxu0 %v1038
        %1086 = vmatprep.subr.bf16.mxu0 0
        %1087 = vmatpush1.bf16.msra.mxu0 %v1039
        %1088 = vmatprep.mubr.bf16.mxu0 %v876
        %1089 = vmatmul.mubr.bf16.gmra.mrb[0].mxu0 %v920
        %v1090 = vpop.f32.mrb[0].mxu0
        %v1091 = vadd.f32 %v958, %v1090
        %v1092 = vpop.f32.mrb[0].mxu0
        %v1093 = vpop.f32.mrb[0].mxu0
        %v1094 = vpop.f32.mrb[0].mxu0
        %1095 = vdwg.mxu0
        %v1096 = vmax.f32 %v1091, 0.0
        %v1097 = vpack.c.bf16 %v1096, %v1096
        %v1099 = vsel %vm655, %v1097, 0
        %1101 = vmatprep.subr.bf16.mxu0 0
        %1102 = vmatpush1.bf16.msra.mxu0 %v1099
        %1103 = vmatprep.subr.bf16.mxu0 0
        %1104 = vmatpush1.bf16.msra.mxu0 0
        %1105 = vmatprep.subr.bf16.mxu0 0
        %1106 = vmatpush1.bf16.msra.mxu0 0
        %1107 = vmatprep.subr.bf16.mxu0 0
        %1108 = vmatpush1.bf16.msra.mxu0 0
        %1109 = vmatprep.subr.bf16.mxu0 0
        %1110 = vmatpush1.bf16.msra.mxu0 0
        %1111 = vmatprep.subr.bf16.mxu0 0
        %1112 = vmatpush1.bf16.msra.mxu0 0
        %1113 = vmatprep.subr.bf16.mxu0 0
        %1114 = vmatpush1.bf16.msra.mxu0 0
        %1115 = vmatprep.subr.bf16.mxu0 0
        %1116 = vmatpush1.bf16.msra.mxu0 0
        %1117 = vmatprep.subr.bf16.mxu0 0
        %1118 = vmatpush1.bf16.msra.mxu0 0
        %1119 = vmatprep.subr.bf16.mxu0 0
        %1120 = vmatpush1.bf16.msra.mxu0 0
        %1121 = vmatprep.subr.bf16.mxu0 0
        %1122 = vmatpush1.bf16.msra.mxu0 0
        %1123 = vmatprep.subr.bf16.mxu0 0
        %1124 = vmatpush1.bf16.msra.mxu0 0
        %1125 = vmatprep.subr.bf16.mxu0 0
        %1126 = vmatpush1.bf16.msra.mxu0 0
        %1127 = vmatprep.subr.bf16.mxu0 0
        %1128 = vmatpush1.bf16.msra.mxu0 0
        %1129 = vmatprep.subr.bf16.mxu0 0
        %1130 = vmatpush1.bf16.msra.mxu0 0
        %1131 = vmatprep.subr.bf16.mxu0 0
        %1132 = vmatpush1.bf16.msra.mxu0 0
        %1133 = vmatprep.mubr.bf16.mxu0 0
        %1134 = vmatmul.mubr.bf16.gmra.mrb[0].mxu0 %v653
        %v1135 = vpop.f32.mrb[0].mxu0
        %v1136 = vadd.f32 0.0, %v1135
        %v1137 = vpop.f32.mrb[0].mxu0
        %v1138 = vpop.f32.mrb[0].mxu0
        %v1139 = vpop.f32.mrb[0].mxu0
        %1140 = vdwg.mxu0
        %v1141 = vpack.c.bf16 %v1136, %v1136
        %v1142 = vld [vmem:[#allocation10] sm:$0xf]
        %v1143 = vld [vmem:[#allocation10 + $0x4] sm:$0xf]
        %v1144 = vld [vmem:[#allocation10 + $0x8] sm:$0xf]
        %v1145 = vld [vmem:[#allocation10 + $0xc] sm:$0xf]
        %v1146 = vld [vmem:[#allocation10 + $0x10] sm:$0xf]
        %v1147 = vld [vmem:[#allocation10 + $0x14] sm:$0xf]
        %v1148 = vld [vmem:[#allocation10 + $0x18] sm:$0xf]
        %v1149 = vld [vmem:[#allocation10 + $0x1c] sm:$0xf]
        %v1150 = vld [vmem:[#allocation10 + $0x20] sm:$0xf]
        %v1151 = vld [vmem:[#allocation10 + $0x24] sm:$0xf]
        %v1152 = vld [vmem:[#allocation10 + $0x28] sm:$0xf]
        %v1153 = vld [vmem:[#allocation10 + $0x2c] sm:$0xf]
        %v1154 = vld [vmem:[#allocation10 + $0x30] sm:$0xf]
        %v1155 = vld [vmem:[#allocation10 + $0x34] sm:$0xf]
        %v1156 = vld [vmem:[#allocation10 + $0x38] sm:$0xf]
        %v1157 = vld [vmem:[#allocation10 + $0x3c] sm:$0xf]
        %v1158 = vld [vmem:[#allocation10 + $0x40] sm:$0xf]
        %v1159 = vld [vmem:[#allocation10 + $0x44] sm:$0xf]
        %v1160 = vld [vmem:[#allocation10 + $0x48] sm:$0xf]
        %v1161 = vld [vmem:[#allocation10 + $0x4c] sm:$0xf]
        %v1162 = vld [vmem:[#allocation10 + $0x50] sm:$0xf]
        %v1163 = vld [vmem:[#allocation10 + $0x54] sm:$0xf]
        %v1164 = vld [vmem:[#allocation10 + $0x58] sm:$0xf]
        %v1165 = vld [vmem:[#allocation10 + $0x5c] sm:$0xf]
        %v1166 = vld [vmem:[#allocation10 + $0x60] sm:$0xf]
        %v1167 = vld [vmem:[#allocation10 + $0x64] sm:$0xf]
        %v1168 = vld [vmem:[#allocation10 + $0x68] sm:$0xf]
        %v1169 = vld [vmem:[#allocation10 + $0x6c] sm:$0xf]
        %v1170 = vld [vmem:[#allocation10 + $0x70] sm:$0xf]
        %v1171 = vld [vmem:[#allocation10 + $0x74] sm:$0xf]
        %v1172 = vld [vmem:[#allocation10 + $0x78] sm:$0xf]
        %v1173 = vld [vmem:[#allocation10 + $0x7c] sm:$0xf]
        %v1174 = vld [vmem:[%s8] sm:$0x1]
        %v1176 = vlaneseq
        %v1177 = vshrl.u32 %v1176, 7
        %v1178 = vsub.s32 0, %v1177
        %v1179 = vrot.slane %v1174, %v1178
        %v1213 = vunpack.c.l.b16 %v1142
        %v1214 = vunpack.c.l.b16 %v1143
        %v1215 = vunpack.c.l.b16 %v1144
        %v1216 = vunpack.c.l.b16 %v1145
        %v1217 = vunpack.c.l.b16 %v1146
        %v1218 = vunpack.c.l.b16 %v1147
        %v1219 = vunpack.c.l.b16 %v1148
        %v1220 = vunpack.c.l.b16 %v1149
        %v1221 = vunpack.c.l.b16 %v1150
        %v1222 = vunpack.c.l.b16 %v1151
        %v1223 = vunpack.c.l.b16 %v1152
        %v1224 = vunpack.c.l.b16 %v1153
        %v1225 = vunpack.c.l.b16 %v1154
        %v1226 = vunpack.c.l.b16 %v1155
        %v1227 = vunpack.c.l.b16 %v1156
        %v1228 = vunpack.c.l.b16 %v1157
        %v1229 = vunpack.c.l.b16 %v1158
        %v1230 = vunpack.c.l.b16 %v1159
        %v1231 = vunpack.c.l.b16 %v1160
        %v1232 = vunpack.c.l.b16 %v1161
        %v1233 = vunpack.c.l.b16 %v1162
        %v1234 = vunpack.c.l.b16 %v1163
        %v1235 = vunpack.c.l.b16 %v1164
        %v1236 = vunpack.c.l.b16 %v1165
        %v1237 = vunpack.c.l.b16 %v1166
        %v1238 = vunpack.c.l.b16 %v1167
        %v1239 = vunpack.c.l.b16 %v1168
        %v1240 = vunpack.c.l.b16 %v1169
        %v1241 = vunpack.c.l.b16 %v1170
        %v1242 = vunpack.c.l.b16 %v1171
        %v1243 = vunpack.c.l.b16 %v1172
        %v1244 = vunpack.c.l.b16 %v1173
        %v1245 = vpack.c.b16 %v1214, %v1213
        %v1246 = vpack.c.b16 %v1216, %v1215
        %v1247 = vpack.c.b16 %v1218, %v1217
        %v1248 = vpack.c.b16 %v1220, %v1219
        %v1249 = vpack.c.b16 %v1222, %v1221
        %v1250 = vpack.c.b16 %v1224, %v1223
        %v1251 = vpack.c.b16 %v1226, %v1225
        %v1252 = vpack.c.b16 %v1228, %v1227
        %v1253 = vpack.c.b16 %v1230, %v1229
        %v1254 = vpack.c.b16 %v1232, %v1231
        %v1255 = vpack.c.b16 %v1234, %v1233
        %v1256 = vpack.c.b16 %v1236, %v1235
        %v1257 = vpack.c.b16 %v1238, %v1237
        %v1258 = vpack.c.b16 %v1240, %v1239
        %v1259 = vpack.c.b16 %v1242, %v1241
        %v1260 = vpack.c.b16 %v1244, %v1243
        %1277 = vmatprep.subr.bf16.mxu0 0
        %1278 = vmatpush1.bf16.msra.mxu0 %v1245
        %1279 = vmatprep.subr.bf16.mxu0 0
        %1280 = vmatpush1.bf16.msra.mxu0 %v1246
        %1281 = vmatprep.subr.bf16.mxu0 0
        %1282 = vmatpush1.bf16.msra.mxu0 %v1247
        %1283 = vmatprep.subr.bf16.mxu0 0
        %1284 = vmatpush1.bf16.msra.mxu0 %v1248
        %1285 = vmatprep.subr.bf16.mxu0 0
        %1286 = vmatpush1.bf16.msra.mxu0 %v1249
        %1287 = vmatprep.subr.bf16.mxu0 0
        %1288 = vmatpush1.bf16.msra.mxu0 %v1250
        %1289 = vmatprep.subr.bf16.mxu0 0
        %1290 = vmatpush1.bf16.msra.mxu0 %v1251
        %1291 = vmatprep.subr.bf16.mxu0 0
        %1292 = vmatpush1.bf16.msra.mxu0 %v1252
        %1293 = vmatprep.subr.bf16.mxu0 0
        %1294 = vmatpush1.bf16.msra.mxu0 %v1253
        %1295 = vmatprep.subr.bf16.mxu0 0
        %1296 = vmatpush1.bf16.msra.mxu0 %v1254
        %1297 = vmatprep.subr.bf16.mxu0 0
        %1298 = vmatpush1.bf16.msra.mxu0 %v1255
        %1299 = vmatprep.subr.bf16.mxu0 0
        %1300 = vmatpush1.bf16.msra.mxu0 %v1256
        %1301 = vmatprep.subr.bf16.mxu0 0
        %1302 = vmatpush1.bf16.msra.mxu0 %v1257
        %1303 = vmatprep.subr.bf16.mxu0 0
        %1304 = vmatpush1.bf16.msra.mxu0 %v1258
        %1305 = vmatprep.subr.bf16.mxu0 0
        %1306 = vmatpush1.bf16.msra.mxu0 %v1259
        %1307 = vmatprep.subr.bf16.mxu0 0
        %1308 = vmatpush1.bf16.msra.mxu0 %v1260
        %1309 = vmatprep.mubr.bf16.mxu0 %v1097
        %1310 = vmatmul.mubr.bf16.gmra.mrb[0].mxu0 %v1141
        %v1311 = vpop.f32.mrb[0].mxu0
        %v1312 = vadd.f32 %v1179, %v1311
        %v1313 = vpop.f32.mrb[0].mxu0
        %v1314 = vpop.f32.mrb[0].mxu0
        %v1315 = vpop.f32.mrb[0].mxu0
        %1316 = vdwg.mxu0
        %v1317 = vmax.f32 %v1312, 0.0
        %v1318 = vpack.c.bf16 %v1317, %v1317
        %v1320 = vsel %vm655, %v1318, 0
        %1322 = vmatprep.subr.bf16.mxu0 0
        %1323 = vmatpush1.bf16.msra.mxu0 %v1320
        %1324 = vmatprep.subr.bf16.mxu0 0
        %1325 = vmatpush1.bf16.msra.mxu0 0
        %1326 = vmatprep.subr.bf16.mxu0 0
        %1327 = vmatpush1.bf16.msra.mxu0 0
        %1328 = vmatprep.subr.bf16.mxu0 0
        %1329 = vmatpush1.bf16.msra.mxu0 0
        %1330 = vmatprep.subr.bf16.mxu0 0
        %1331 = vmatpush1.bf16.msra.mxu0 0
        %1332 = vmatprep.subr.bf16.mxu0 0
        %1333 = vmatpush1.bf16.msra.mxu0 0
        %1334 = vmatprep.subr.bf16.mxu0 0
        %1335 = vmatpush1.bf16.msra.mxu0 0
        %1336 = vmatprep.subr.bf16.mxu0 0
        %1337 = vmatpush1.bf16.msra.mxu0 0
        %1338 = vmatprep.subr.bf16.mxu0 0
        %1339 = vmatpush1.bf16.msra.mxu0 0
        %1340 = vmatprep.subr.bf16.mxu0 0
        %1341 = vmatpush1.bf16.msra.mxu0 0
        %1342 = vmatprep.subr.bf16.mxu0 0
        %1343 = vmatpush1.bf16.msra.mxu0 0
        %1344 = vmatprep.subr.bf16.mxu0 0
        %1345 = vmatpush1.bf16.msra.mxu0 0
        %1346 = vmatprep.subr.bf16.mxu0 0
        %1347 = vmatpush1.bf16.msra.mxu0 0
        %1348 = vmatprep.subr.bf16.mxu0 0
        %1349 = vmatpush1.bf16.msra.mxu0 0
        %1350 = vmatprep.subr.bf16.mxu0 0
        %1351 = vmatpush1.bf16.msra.mxu0 0
        %1352 = vmatprep.subr.bf16.mxu0 0
        %1353 = vmatpush1.bf16.msra.mxu0 0
        %1354 = vmatprep.mubr.bf16.mxu0 0
        %1355 = vmatmul.mubr.bf16.gmra.mrb[0].mxu0 %v653
        %v1356 = vpop.f32.mrb[0].mxu0
        %v1357 = vadd.f32 0.0, %v1356
        %v1358 = vpop.f32.mrb[0].mxu0
        %v1359 = vpop.f32.mrb[0].mxu0
        %v1360 = vpop.f32.mrb[0].mxu0
        %1361 = vdwg.mxu0
        %v1362 = vpack.c.bf16 %v1357, %v1357
        %v1363 = vld [vmem:[#allocation11] sm:$0xff]
        %v1364 = vld [vmem:[#allocation11 + $0x8] sm:$0xff]
        %v1365 = vld [vmem:[#allocation11 + $0x10] sm:$0xff]
        %v1366 = vld [vmem:[#allocation11 + $0x18] sm:$0xff]
        %v1367 = vld [vmem:[#allocation11 + $0x20] sm:$0xff]
        %v1368 = vld [vmem:[#allocation11 + $0x28] sm:$0xff]
        %v1369 = vld [vmem:[#allocation11 + $0x30] sm:$0xff]
        %v1370 = vld [vmem:[#allocation11 + $0x38] sm:$0xff]
        %v1371 = vld [vmem:[#allocation11 + $0x40] sm:$0xff]
        %v1372 = vld [vmem:[#allocation11 + $0x48] sm:$0xff]
        %v1373 = vld [vmem:[#allocation11 + $0x50] sm:$0xff]
        %v1374 = vld [vmem:[#allocation11 + $0x58] sm:$0xff]
        %v1375 = vld [vmem:[#allocation11 + $0x60] sm:$0xff]
        %v1376 = vld [vmem:[#allocation11 + $0x68] sm:$0xff]
        %v1377 = vld [vmem:[#allocation11 + $0x70] sm:$0xff]
        %v1378 = vld [vmem:[#allocation11 + $0x78] sm:$0xff]
        %v1379 = vld [vmem:[#allocation11 + $0x80] sm:$0xff]
        %v1380 = vld [vmem:[#allocation11 + $0x88] sm:$0xff]
        %v1381 = vld [vmem:[#allocation11 + $0x90] sm:$0xff]
        %v1382 = vld [vmem:[#allocation11 + $0x98] sm:$0xff]
        %v1383 = vld [vmem:[#allocation11 + $0xa0] sm:$0xff]
        %v1384 = vld [vmem:[#allocation11 + $0xa8] sm:$0xff]
        %v1385 = vld [vmem:[#allocation11 + $0xb0] sm:$0xff]
        %v1386 = vld [vmem:[#allocation11 + $0xb8] sm:$0xff]
        %v1387 = vld [vmem:[#allocation11 + $0xc0] sm:$0xff]
        %v1388 = vld [vmem:[#allocation11 + $0xc8] sm:$0xff]
        %v1389 = vld [vmem:[#allocation11 + $0xd0] sm:$0xff]
        %v1390 = vld [vmem:[#allocation11 + $0xd8] sm:$0xff]
        %v1391 = vld [vmem:[#allocation11 + $0xe0] sm:$0xff]
        %v1392 = vld [vmem:[#allocation11 + $0xe8] sm:$0xff]
        %v1393 = vld [vmem:[#allocation11 + $0xf0] sm:$0xff]
        %v1394 = vld [vmem:[#allocation11 + $0xf8] sm:$0xff]
        %v1395 = vld [vmem:[%s10] sm:$0x3]
        %v1397 = vlaneseq
        %v1398 = vshrl.u32 %v1397, 7
        %v1399 = vsub.s32 0, %v1398
        %v1400 = vrot.slane %v1395, %v1399
        %v1401 = vlaneseq
        %v1402 = vshrl.u32 %v1401, 7
        %v1403 = vsub.s32 1, %v1402
        %v1404 = vrot.slane %v1395, %v1403
        %v1439 = vunpack.c.l.b16 %v1363
        %v1440 = vunpack.c.h.b16 %v1363
        %v1441 = vunpack.c.l.b16 %v1364
        %v1442 = vunpack.c.h.b16 %v1364
        %v1443 = vunpack.c.l.b16 %v1365
        %v1444 = vunpack.c.h.b16 %v1365
        %v1445 = vunpack.c.l.b16 %v1366
        %v1446 = vunpack.c.h.b16 %v1366
        %v1447 = vunpack.c.l.b16 %v1367
        %v1448 = vunpack.c.h.b16 %v1367
        %v1449 = vunpack.c.l.b16 %v1368
        %v1450 = vunpack.c.h.b16 %v1368
        %v1451 = vunpack.c.l.b16 %v1369
        %v1452 = vunpack.c.h.b16 %v1369
        %v1453 = vunpack.c.l.b16 %v1370
        %v1454 = vunpack.c.h.b16 %v1370
        %v1455 = vunpack.c.l.b16 %v1371
        %v1456 = vunpack.c.h.b16 %v1371
        %v1457 = vunpack.c.l.b16 %v1372
        %v1458 = vunpack.c.h.b16 %v1372
        %v1459 = vunpack.c.l.b16 %v1373
        %v1460 = vunpack.c.h.b16 %v1373
        %v1461 = vunpack.c.l.b16 %v1374
        %v1462 = vunpack.c.h.b16 %v1374
        %v1463 = vunpack.c.l.b16 %v1375
        %v1464 = vunpack.c.h.b16 %v1375
        %v1465 = vunpack.c.l.b16 %v1376
        %v1466 = vunpack.c.h.b16 %v1376
        %v1467 = vunpack.c.l.b16 %v1377
        %v1468 = vunpack.c.h.b16 %v1377
        %v1469 = vunpack.c.l.b16 %v1378
        %v1470 = vunpack.c.h.b16 %v1378
        %v1471 = vunpack.c.l.b16 %v1379
        %v1472 = vunpack.c.h.b16 %v1379
        %v1473 = vunpack.c.l.b16 %v1380
        %v1474 = vunpack.c.h.b16 %v1380
        %v1475 = vunpack.c.l.b16 %v1381
        %v1476 = vunpack.c.h.b16 %v1381
        %v1477 = vunpack.c.l.b16 %v1382
        %v1478 = vunpack.c.h.b16 %v1382
        %v1479 = vunpack.c.l.b16 %v1383
        %v1480 = vunpack.c.h.b16 %v1383
        %v1481 = vunpack.c.l.b16 %v1384
        %v1482 = vunpack.c.h.b16 %v1384
        %v1483 = vunpack.c.l.b16 %v1385
        %v1484 = vunpack.c.h.b16 %v1385
        %v1485 = vunpack.c.l.b16 %v1386
        %v1486 = vunpack.c.h.b16 %v1386
        %v1487 = vunpack.c.l.b16 %v1387
        %v1488 = vunpack.c.h.b16 %v1387
        %v1489 = vunpack.c.l.b16 %v1388
        %v1490 = vunpack.c.h.b16 %v1388
        %v1491 = vunpack.c.l.b16 %v1389
        %v1492 = vunpack.c.h.b16 %v1389
        %v1493 = vunpack.c.l.b16 %v1390
        %v1494 = vunpack.c.h.b16 %v1390
        %v1495 = vunpack.c.l.b16 %v1391
        %v1496 = vunpack.c.h.b16 %v1391
        %v1497 = vunpack.c.l.b16 %v1392
        %v1498 = vunpack.c.h.b16 %v1392
        %v1499 = vunpack.c.l.b16 %v1393
        %v1500 = vunpack.c.h.b16 %v1393
        %v1501 = vunpack.c.l.b16 %v1394
        %v1502 = vunpack.c.h.b16 %v1394
        %v1503 = vpack.c.b16 %v1441, %v1439
        %v1504 = vpack.c.b16 %v1442, %v1440
        %v1505 = vpack.c.b16 %v1445, %v1443
        %v1506 = vpack.c.b16 %v1446, %v1444
        %v1507 = vpack.c.b16 %v1449, %v1447
        %v1508 = vpack.c.b16 %v1450, %v1448
        %v1509 = vpack.c.b16 %v1453, %v1451
        %v1510 = vpack.c.b16 %v1454, %v1452
        %v1511 = vpack.c.b16 %v1457, %v1455
        %v1512 = vpack.c.b16 %v1458, %v1456
        %v1513 = vpack.c.b16 %v1461, %v1459
        %v1514 = vpack.c.b16 %v1462, %v1460
        %v1515 = vpack.c.b16 %v1465, %v1463
        %v1516 = vpack.c.b16 %v1466, %v1464
        %v1517 = vpack.c.b16 %v1469, %v1467
        %v1518 = vpack.c.b16 %v1470, %v1468
        %v1519 = vpack.c.b16 %v1473, %v1471
        %v1520 = vpack.c.b16 %v1474, %v1472
        %v1521 = vpack.c.b16 %v1477, %v1475
        %v1522 = vpack.c.b16 %v1478, %v1476
        %v1523 = vpack.c.b16 %v1481, %v1479
        %v1524 = vpack.c.b16 %v1482, %v1480
        %v1525 = vpack.c.b16 %v1485, %v1483
        %v1526 = vpack.c.b16 %v1486, %v1484
        %v1527 = vpack.c.b16 %v1489, %v1487
        %v1528 = vpack.c.b16 %v1490, %v1488
        %v1529 = vpack.c.b16 %v1493, %v1491
        %v1530 = vpack.c.b16 %v1494, %v1492
        %v1531 = vpack.c.b16 %v1497, %v1495
        %v1532 = vpack.c.b16 %v1498, %v1496
        %v1533 = vpack.c.b16 %v1501, %v1499
        %v1534 = vpack.c.b16 %v1502, %v1500
        %1567 = vmatprep.subr.bf16.mxu0 %v1504
        %1568 = vmatpush1.bf16.msra.mxu0 %v1503
        %1569 = vmatprep.subr.bf16.mxu0 %v1506
        %1570 = vmatpush1.bf16.msra.mxu0 %v1505
        %1571 = vmatprep.subr.bf16.mxu0 %v1508
        %1572 = vmatpush1.bf16.msra.mxu0 %v1507
        %1573 = vmatprep.subr.bf16.mxu0 %v1510
        %1574 = vmatpush1.bf16.msra.mxu0 %v1509
        %1575 = vmatprep.subr.bf16.mxu0 %v1512
        %1576 = vmatpush1.bf16.msra.mxu0 %v1511
        %1577 = vmatprep.subr.bf16.mxu0 %v1514
        %1578 = vmatpush1.bf16.msra.mxu0 %v1513
        %1579 = vmatprep.subr.bf16.mxu0 %v1516
        %1580 = vmatpush1.bf16.msra.mxu0 %v1515
        %1581 = vmatprep.subr.bf16.mxu0 %v1518
        %1582 = vmatpush1.bf16.msra.mxu0 %v1517
        %1583 = vmatprep.subr.bf16.mxu0 %v1520
        %1584 = vmatpush1.bf16.msra.mxu0 %v1519
        %1585 = vmatprep.subr.bf16.mxu0 %v1522
        %1586 = vmatpush1.bf16.msra.mxu0 %v1521
        %1587 = vmatprep.subr.bf16.mxu0 %v1524
        %1588 = vmatpush1.bf16.msra.mxu0 %v1523
        %1589 = vmatprep.subr.bf16.mxu0 %v1526
        %1590 = vmatpush1.bf16.msra.mxu0 %v1525
        %1591 = vmatprep.subr.bf16.mxu0 %v1528
        %1592 = vmatpush1.bf16.msra.mxu0 %v1527
        %1593 = vmatprep.subr.bf16.mxu0 %v1530
        %1594 = vmatpush1.bf16.msra.mxu0 %v1529
        %1595 = vmatprep.subr.bf16.mxu0 %v1532
        %1596 = vmatpush1.bf16.msra.mxu0 %v1531
        %1597 = vmatprep.subr.bf16.mxu0 %v1534
        %1598 = vmatpush1.bf16.msra.mxu0 %v1533
        %1599 = vmatprep.mubr.bf16.mxu0 %v1318
        %1600 = vmatmul.mubr.bf16.gmra.mrb[0].mxu0 %v1362
        %v1601 = vpop.f32.mrb[0].mxu0
        %v1602 = vadd.f32 %v1400, %v1601
        %v1603 = vpop.f32.mrb[0].mxu0
        %v1604 = vadd.f32 %v1404, %v1603
        %v1605 = vpop.f32.mrb[0].mxu0
        %v1606 = vpop.f32.mrb[0].mxu0
        %1607 = vdwg.mxu0
        %v1608 = vmax.f32 %v1602, 0.0
        %v1609 = vmax.f32 %v1604, 0.0
        %v1610 = vpack.c.bf16 %v1608, %v1608
        %v1611 = vpack.c.bf16 %v1609, %v1609
        %v1612 = vld [vmem:[%s647] sm:$0x1]
        %v1613 = vunpack.c.l.bf16 %v1610
        %v1614 = vunpack.c.l.bf16 %v1611
        %v1616 = vsel %vm651, %v1612, 0
        %1618 = vmatprep.subr.mxu0 %v1614
        %1619 = vmatpush1.msra.mxu0 %v1613
        %1620 = vmatprep.subr.mxu0 0.0
        %1621 = vmatpush1.msra.mxu0 0.0
        %1622 = vmatprep.subr.mxu0 0.0
        %1623 = vmatpush1.msra.mxu0 0.0
        %1624 = vmatprep.subr.mxu0 0.0
        %1625 = vmatpush1.msra.mxu0 0.0
        %1626 = vmatprep.subr.mxu0 0.0
        %1627 = vmatpush1.msra.mxu0 0.0
        %1628 = vmatprep.subr.mxu0 0.0
        %1629 = vmatpush1.msra.mxu0 0.0
        %1630 = vmatprep.subr.mxu0 0.0
        %1631 = vmatpush1.msra.mxu0 0.0
        %1632 = vmatprep.subr.mxu0 0.0
        %1633 = vmatpush1.msra.mxu0 0.0
        %1634 = vmatprep.subr.mxu0 0.0
        %1635 = vmatpush1.msra.mxu0 0.0
        %1636 = vmatprep.subr.mxu0 0.0
        %1637 = vmatpush1.msra.mxu0 0.0
        %1638 = vmatprep.subr.mxu0 0.0
        %1639 = vmatpush1.msra.mxu0 0.0
        %1640 = vmatprep.subr.mxu0 0.0
        %1641 = vmatpush1.msra.mxu0 0.0
        %1642 = vmatprep.subr.mxu0 0.0
        %1643 = vmatpush1.msra.mxu0 0.0
        %1644 = vmatprep.subr.mxu0 0.0
        %1645 = vmatpush1.msra.mxu0 0.0
        %1646 = vmatprep.subr.mxu0 0.0
        %1647 = vmatpush1.msra.mxu0 0.0
        %1648 = vmatprep.subr.mxu0 0.0
        %1649 = vmatpush1.msra.mxu0 0.0
        %1650 = vmatprep.subr.mxu0 0.0
        %1651 = vmatpush1.msra.mxu0 0.0
        %1652 = vmatprep.subr.mxu0 0.0
        %1653 = vmatpush1.msra.mxu0 0.0
        %1654 = vmatprep.subr.mxu0 0.0
        %1655 = vmatpush1.msra.mxu0 0.0
        %1656 = vmatprep.subr.mxu0 0.0
        %1657 = vmatpush1.msra.mxu0 0.0
        %1658 = vmatprep.subr.mxu0 0.0
        %1659 = vmatpush1.msra.mxu0 0.0
        %1660 = vmatprep.subr.mxu0 0.0
        %1661 = vmatpush1.msra.mxu0 0.0
        %1662 = vmatprep.subr.mxu0 0.0
        %1663 = vmatpush1.msra.mxu0 0.0
        %1664 = vmatprep.subr.mxu0 0.0
        %1665 = vmatpush1.msra.mxu0 0.0
        %1666 = vmatprep.subr.mxu0 0.0
        %1667 = vmatpush1.msra.mxu0 0.0
        %1668 = vmatprep.subr.mxu0 0.0
        %1669 = vmatpush1.msra.mxu0 0.0
        %1670 = vmatprep.subr.mxu0 0.0
        %1671 = vmatpush1.msra.mxu0 0.0
        %1672 = vmatprep.subr.mxu0 0.0
        %1673 = vmatpush1.msra.mxu0 0.0
        %1674 = vmatprep.subr.mxu0 0.0
        %1675 = vmatpush1.msra.mxu0 0.0
        %1676 = vmatprep.subr.mxu0 0.0
        %1677 = vmatpush1.msra.mxu0 0.0
        %1678 = vmatprep.subr.mxu0 0.0
        %1679 = vmatpush1.msra.mxu0 0.0
        %1680 = vmatprep.subr.mxu0 0.0
        %1681 = vmatpush1.msra.mxu0 0.0
        %1682 = vmatprep.mubr.f32.mxu0 0.0
        %1683 = vmatmul.mubr.f32.gmra.mrb[0].mxu0 %v1616
        %v1684 = vpop.f32.mrb[0].mxu0
        %v1685 = vadd.f32 0.0, %v1684
        %v1686 = vpop.f32.mrb[0].mxu0
        %v1687 = vadd.f32 0.0, %v1686
        %1688 = vdwg.mxu0
        %v1689 = vpack.c.bf16 %v1685, %v1685
        %v1690 = vpack.c.bf16 %v1687, %v1687
        %v1691 = vld [vmem:[#allocation13] sm:$0xf]
        %v1692 = vld [vmem:[#allocation13 + $0x4] sm:$0xf]
        %v1693 = vld [vmem:[#allocation13 + $0x8] sm:$0xf]
        %v1694 = vld [vmem:[#allocation13 + $0xc] sm:$0xf]
        %v1695 = vld [vmem:[#allocation13 + $0x10] sm:$0xf]
        %v1696 = vld [vmem:[#allocation13 + $0x14] sm:$0xf]
        %v1697 = vld [vmem:[#allocation13 + $0x18] sm:$0xf]
        %v1698 = vld [vmem:[#allocation13 + $0x1c] sm:$0xf]
        %v1699 = vld [vmem:[#allocation13 + $0x20] sm:$0xf]
        %v1700 = vld [vmem:[#allocation13 + $0x24] sm:$0xf]
        %v1701 = vld [vmem:[#allocation13 + $0x28] sm:$0xf]
        %v1702 = vld [vmem:[#allocation13 + $0x2c] sm:$0xf]
        %v1703 = vld [vmem:[#allocation13 + $0x30] sm:$0xf]
        %v1704 = vld [vmem:[#allocation13 + $0x34] sm:$0xf]
        %v1705 = vld [vmem:[#allocation13 + $0x38] sm:$0xf]
        %v1706 = vld [vmem:[#allocation13 + $0x3c] sm:$0xf]
        %v1707 = vld [vmem:[#allocation13 + $0x40] sm:$0xf]
        %v1708 = vld [vmem:[#allocation13 + $0x44] sm:$0xf]
        %v1709 = vld [vmem:[#allocation13 + $0x48] sm:$0xf]
        %v1710 = vld [vmem:[#allocation13 + $0x4c] sm:$0xf]
        %v1711 = vld [vmem:[#allocation13 + $0x50] sm:$0xf]
        %v1712 = vld [vmem:[#allocation13 + $0x54] sm:$0xf]
        %v1713 = vld [vmem:[#allocation13 + $0x58] sm:$0xf]
        %v1714 = vld [vmem:[#allocation13 + $0x5c] sm:$0xf]
        %v1715 = vld [vmem:[#allocation13 + $0x60] sm:$0xf]
        %v1716 = vld [vmem:[#allocation13 + $0x64] sm:$0xf]
        %v1717 = vld [vmem:[#allocation13 + $0x68] sm:$0xf]
        %v1718 = vld [vmem:[#allocation13 + $0x6c] sm:$0xf]
        %v1719 = vld [vmem:[#allocation13 + $0x70] sm:$0xf]
        %v1720 = vld [vmem:[#allocation13 + $0x74] sm:$0xf]
        %v1721 = vld [vmem:[#allocation13 + $0x78] sm:$0xf]
        %v1722 = vld [vmem:[#allocation13 + $0x7c] sm:$0xf]
        %v1723 = vld [vmem:[%s12] sm:$0x1]
        %v1756 = vunpack.c.l.b16 %v1691
        %v1757 = vunpack.c.l.b16 %v1692
        %v1758 = vunpack.c.l.b16 %v1693
        %v1759 = vunpack.c.l.b16 %v1694
        %v1760 = vunpack.c.l.b16 %v1695
        %v1761 = vunpack.c.l.b16 %v1696
        %v1762 = vunpack.c.l.b16 %v1697
        %v1763 = vunpack.c.l.b16 %v1698
        %v1764 = vunpack.c.l.b16 %v1699
        %v1765 = vunpack.c.l.b16 %v1700
        %v1766 = vunpack.c.l.b16 %v1701
        %v1767 = vunpack.c.l.b16 %v1702
        %v1768 = vunpack.c.l.b16 %v1703
        %v1769 = vunpack.c.l.b16 %v1704
        %v1770 = vunpack.c.l.b16 %v1705
        %v1771 = vunpack.c.l.b16 %v1706
        %v1772 = vunpack.c.l.b16 %v1707
        %v1773 = vunpack.c.l.b16 %v1708
        %v1774 = vunpack.c.l.b16 %v1709
        %v1775 = vunpack.c.l.b16 %v1710
        %v1776 = vunpack.c.l.b16 %v1711
        %v1777 = vunpack.c.l.b16 %v1712
        %v1778 = vunpack.c.l.b16 %v1713
        %v1779 = vunpack.c.l.b16 %v1714
        %v1780 = vunpack.c.l.b16 %v1715
        %v1781 = vunpack.c.l.b16 %v1716
        %v1782 = vunpack.c.l.b16 %v1717
        %v1783 = vunpack.c.l.b16 %v1718
        %v1784 = vunpack.c.l.b16 %v1719
        %v1785 = vunpack.c.l.b16 %v1720
        %v1786 = vunpack.c.l.b16 %v1721
        %v1787 = vunpack.c.l.b16 %v1722
        %v1788 = vpack.c.b16 %v1757, %v1756
        %v1789 = vpack.c.b16 %v1759, %v1758
        %v1790 = vpack.c.b16 %v1761, %v1760
        %v1791 = vpack.c.b16 %v1763, %v1762
        %v1792 = vpack.c.b16 %v1765, %v1764
        %v1793 = vpack.c.b16 %v1767, %v1766
        %v1794 = vpack.c.b16 %v1769, %v1768
        %v1795 = vpack.c.b16 %v1771, %v1770
        %v1796 = vpack.c.b16 %v1773, %v1772
        %v1797 = vpack.c.b16 %v1775, %v1774
        %v1798 = vpack.c.b16 %v1777, %v1776
        %v1799 = vpack.c.b16 %v1779, %v1778
        %v1800 = vpack.c.b16 %v1781, %v1780
        %v1801 = vpack.c.b16 %v1783, %v1782
        %v1802 = vpack.c.b16 %v1785, %v1784
        %v1803 = vpack.c.b16 %v1787, %v1786
        %1820 = vmatprep.subr.bf16.mxu0 0
        %1821 = vmatpush1.bf16.msra.mxu0 %v1788
        %1822 = vmatprep.subr.bf16.mxu0 0
        %1823 = vmatpush1.bf16.msra.mxu0 %v1789
        %1824 = vmatprep.subr.bf16.mxu0 0
        %1825 = vmatpush1.bf16.msra.mxu0 %v1790
        %1826 = vmatprep.subr.bf16.mxu0 0
        %1827 = vmatpush1.bf16.msra.mxu0 %v1791
        %1828 = vmatprep.subr.bf16.mxu0 0
        %1829 = vmatpush1.bf16.msra.mxu0 %v1792
        %1830 = vmatprep.subr.bf16.mxu0 0
        %1831 = vmatpush1.bf16.msra.mxu0 %v1793
        %1832 = vmatprep.subr.bf16.mxu0 0
        %1833 = vmatpush1.bf16.msra.mxu0 %v1794
        %1834 = vmatprep.subr.bf16.mxu0 0
        %1835 = vmatpush1.bf16.msra.mxu0 %v1795
        %1836 = vmatprep.subr.bf16.mxu0 0
        %1837 = vmatpush1.bf16.msra.mxu0 %v1796
        %1838 = vmatprep.subr.bf16.mxu0 0
        %1839 = vmatpush1.bf16.msra.mxu0 %v1797
        %1840 = vmatprep.subr.bf16.mxu0 0
        %1841 = vmatpush1.bf16.msra.mxu0 %v1798
        %1842 = vmatprep.subr.bf16.mxu0 0
        %1843 = vmatpush1.bf16.msra.mxu0 %v1799
        %1844 = vmatprep.subr.bf16.mxu0 0
        %1845 = vmatpush1.bf16.msra.mxu0 %v1800
        %1846 = vmatprep.subr.bf16.mxu0 0
        %1847 = vmatpush1.bf16.msra.mxu0 %v1801
        %1848 = vmatprep.subr.bf16.mxu0 0
        %1849 = vmatpush1.bf16.msra.mxu0 %v1802
        %1850 = vmatprep.subr.bf16.mxu0 0
        %1851 = vmatpush1.bf16.msra.mxu0 %v1803
        %1852 = vmatprep.mubr.bf16.mxu0 %v1690
        %1853 = vmatmul.mubr.bf16.gmra.mrb[0].mxu0 %v1689
        %v1854 = vpop.f32.mrb[0].mxu0
        %v1855 = vadd.f32 %v1723, %v1854
        %v1856 = vpop.f32.mrb[0].mxu0
        %v1857 = vpop.f32.mrb[0].mxu0
        %v1858 = vpop.f32.mrb[0].mxu0
        %1859 = vdwg.mxu0
        %v1860 = vpack.c.bf16 %v1855, %v1855
        %v1861 = vld [vmem:[#allocation14] sm:$0xf]
        %v1862 = vld [vmem:[#allocation14 + $0x4] sm:$0xf]
        %v1863 = vld [vmem:[#allocation14 + $0x8] sm:$0xf]
        %v1864 = vld [vmem:[#allocation14 + $0xc] sm:$0xf]
        %v1865 = vld [vmem:[#allocation14 + $0x10] sm:$0xf]
        %v1866 = vld [vmem:[#allocation14 + $0x14] sm:$0xf]
        %v1867 = vld [vmem:[#allocation14 + $0x18] sm:$0xf]
        %v1868 = vld [vmem:[#allocation14 + $0x1c] sm:$0xf]
        %v1869 = vld [vmem:[#allocation14 + $0x20] sm:$0xf]
        %v1870 = vld [vmem:[#allocation14 + $0x24] sm:$0xf]
        %v1871 = vld [vmem:[#allocation14 + $0x28] sm:$0xf]
        %v1872 = vld [vmem:[#allocation14 + $0x2c] sm:$0xf]
        %v1873 = vld [vmem:[#allocation14 + $0x30] sm:$0xf]
        %v1874 = vld [vmem:[#allocation14 + $0x34] sm:$0xf]
        %v1875 = vld [vmem:[#allocation14 + $0x38] sm:$0xf]
        %v1876 = vld [vmem:[#allocation14 + $0x3c] sm:$0xf]
        %v1877 = vld [vmem:[%s14] sm:$0x1]
        %v1894 = vunpack.c.l.b16 %v1861
        %v1895 = vunpack.c.l.b16 %v1862
        %v1896 = vunpack.c.l.b16 %v1863
        %v1897 = vunpack.c.l.b16 %v1864
        %v1898 = vunpack.c.l.b16 %v1865
        %v1899 = vunpack.c.l.b16 %v1866
        %v1900 = vunpack.c.l.b16 %v1867
        %v1901 = vunpack.c.l.b16 %v1868
        %v1902 = vunpack.c.l.b16 %v1869
        %v1903 = vunpack.c.l.b16 %v1870
        %v1904 = vunpack.c.l.b16 %v1871
        %v1905 = vunpack.c.l.b16 %v1872
        %v1906 = vunpack.c.l.b16 %v1873
        %v1907 = vunpack.c.l.b16 %v1874
        %v1908 = vunpack.c.l.b16 %v1875
        %v1909 = vunpack.c.l.b16 %v1876
        %v1910 = vpack.c.b16 %v1895, %v1894
        %v1911 = vpack.c.b16 %v1897, %v1896
        %v1912 = vpack.c.b16 %v1899, %v1898
        %v1913 = vpack.c.b16 %v1901, %v1900
        %v1914 = vpack.c.b16 %v1903, %v1902
        %v1915 = vpack.c.b16 %v1905, %v1904
        %v1916 = vpack.c.b16 %v1907, %v1906
        %v1917 = vpack.c.b16 %v1909, %v1908
        %1926 = vmatprep.subr.bf16.mxu0 0
        %1927 = vmatpush1.bf16.msra.mxu0 %v1910
        %1928 = vmatprep.subr.bf16.mxu0 0
        %1929 = vmatpush1.bf16.msra.mxu0 %v1911
        %1930 = vmatprep.subr.bf16.mxu0 0
        %1931 = vmatpush1.bf16.msra.mxu0 %v1912
        %1932 = vmatprep.subr.bf16.mxu0 0
        %1933 = vmatpush1.bf16.msra.mxu0 %v1913
        %1934 = vmatprep.subr.bf16.mxu0 0
        %1935 = vmatpush1.bf16.msra.mxu0 %v1914
        %1936 = vmatprep.subr.bf16.mxu0 0
        %1937 = vmatpush1.bf16.msra.mxu0 %v1915
        %1938 = vmatprep.subr.bf16.mxu0 0
        %1939 = vmatpush1.bf16.msra.mxu0 %v1916
        %1940 = vmatprep.subr.bf16.mxu0 0
        %1941 = vmatpush1.bf16.msra.mxu0 %v1917
        %1942 = vmatprep.subr.bf16.mxu0 0
        %1943 = vmatpush1.bf16.msra.mxu0 0
        %1944 = vmatprep.subr.bf16.mxu0 0
        %1945 = vmatpush1.bf16.msra.mxu0 0
        %1946 = vmatprep.subr.bf16.mxu0 0
        %1947 = vmatpush1.bf16.msra.mxu0 0
        %1948 = vmatprep.subr.bf16.mxu0 0
        %1949 = vmatpush1.bf16.msra.mxu0 0
        %1950 = vmatprep.subr.bf16.mxu0 0
        %1951 = vmatpush1.bf16.msra.mxu0 0
        %1952 = vmatprep.subr.bf16.mxu0 0
        %1953 = vmatpush1.bf16.msra.mxu0 0
        %1954 = vmatprep.subr.bf16.mxu0 0
        %1955 = vmatpush1.bf16.msra.mxu0 0
        %1956 = vmatprep.subr.bf16.mxu0 0
        %1957 = vmatpush1.bf16.msra.mxu0 0
        %1958 = vmatprep.mubr.bf16.mxu0 0
        %1959 = vmatmul.mubr.bf16.gmra.mrb[0].mxu0 %v1860
        %v1960 = vpop.f32.mrb[0].mxu0
        %v1961 = vadd.f32 %v1877, %v1960
        %v1962 = vpop.f32.mrb[0].mxu0
        %v1963 = vpop.f32.mrb[0].mxu0
        %v1964 = vpop.f32.mrb[0].mxu0
        %1965 = vdwg.mxu0
        %vm1966 = vcmask 1040384
        %v1967 = vsel %vm1966, %v1961, -inf
        %1968 = vmax.xlane.f32.xlu0 %v1967
        %v1969 = vpop.xlane.xlu0 %1968
        %v1970 = vsub.f32 %v1961, %v1969
        %v1971 = vmul.f32 %v1970, 1.442695
        %v1972 = vpow.pop %v1971
        %v1973 = vsel %vm1966, %v1972, 0.0
        %1974 = vadd.xlane.f32.xlu0 %v1973
        %v1975 = vpop.xlane.xlu0 %1974
        %v1976 = vlog2.pop %v1975
        %v1977 = vmul.f32 %v1976, 0.6931472
        %v1978 = vadd.f32 %v1977, %v1969
        %v1979 = vsub.f32 %v1961, %v1978
        %v1980 = vlaneseq
        %v1981 = vshrl.u32 %v1980, 7
        %v1982 = vsub.s32 0, %v1981
        %v1983 = vrot.slane %v1979, %v1982
        %1984 = vst [vmem:[%s644] sm:$0xff] %v1983
        %s1985 = sand.u32 %s376, 1
        %s1986 = scalar_lea.sflag [#allocation4], %s1985
        %s1987 = sand.u32 %s376, 1
        %s1988 = smul.addr %s1987, 8
        %s1989 = scalar_lea.vmem [#allocation16], %s1988
        // Predicated region
        $region113: #{tpu_custom_call.1} parent=79 // pred_check
          %p1990 = pneg %p386
        $region114: #{tpu_custom_call.1} parent=79 // pred_check_branch
          %1992 = sbr.rel (%p1990) target = $region116
        $region115: #{tpu_custom_call.1} parent=79 // pred_region
          %s1994 = ssub.s32 128, 128
          %1995 = vsyncadd %s1986, %s1994
          %s1996 = smul.addr %s38, 128
          %s1997 = scalar_lea.hbm %s15, %s1996
          %s1999 = sshll.u32 %s1989, 4
          %s2000 = int_to_ptr.vmem [resolvable:$true] %s1999
          %2002 = dma.vmem_to_hbm [thread:$0]  %s2000, 128, %s1997, %s1986
        $region116: #{tpu_custom_call.1} parent=79 // pred_fallthru
          _
      $region80: #{tpu_custom_call.1} parent=5 // pred_fallthru
        _
      %p2003 = scmp.le.s32.totalorder 2, %s33
      // Predicated region
      $region117: #{tpu_custom_call.1} parent=5 // pred_check
        %p2004 = pneg %p2003
      $region118: #{tpu_custom_call.1} parent=5 // pred_check_branch
        %2006 = sbr.rel (%p2004) target = $region120
      $region119: #{tpu_custom_call.1} parent=5 // pred_region
        %s2007 = ssub.s32 %s33, 2
        // Predicated region
        $region121: #{tpu_custom_call.1} parent=119 // pred_check
          %p2008 = pneg %p392
        $region122: #{tpu_custom_call.1} parent=119 // pred_check_branch
          %2010 = sbr.rel (%p2008) target = $region124
        $region123: #{tpu_custom_call.1} parent=119 // pred_region
          %s2011 = sand.u32 %s377, 1
          %s2012 = scalar_lea.sflag [#allocation4], %s2011
          %s2013 = sand.u32 %s377, 1
          %s2014 = smul.addr %s2013, 8
          %s2015 = scalar_lea.vmem [#allocation16], %s2014
          %2016 = dma.done %s2012, 128
        $region124: #{tpu_custom_call.1} parent=119 // pred_fallthru
          _
      $region120: #{tpu_custom_call.1} parent=5 // pred_fallthru
        _
    $region6: #{tpu_custom_call.1} parent=1 // loop_footer
      %s37 = sadd.s32 1, %s33
    $region7: #{tpu_custom_call.1} parent=1 // loop_footer_branch
      %32 = sbr.rel target = $region3
    $region8: #{tpu_custom_call.1} parent=1 // loop_exit
      _
    %2017 = vsyncpa [#allocation3], 1
    %s2018 = scalar_lea.sflag [#allocation3], 1
    %2019 = vsyncpa %s2018, 1
    %2020 = vsyncpa [#allocation6], 1
    %s2021 = scalar_lea.sflag [#allocation6], 1
    %2022 = vsyncpa %s2021, 1
    %2023 = vsyncpa [#allocation9], 1
    %2024 = vsyncpa [#allocation12], 1
    %2025 = vsyncpa [#allocation15], 1
    %2026 = vsyncpa [#allocation4], 1
    %s2027 = scalar_lea.sflag [#allocation4], 1
    %2028 = vsyncpa %s2027, 1

</llo_original>
